<compile_context>
chip_gen: v6e
topology: v6e:2x2x1
jax: 0.10.0
libtpu: 0.0.40
codegen_flags: <defaults>
</compile_context>

<pallas_src>
import functools

import jax
import jax.numpy as jnp
from jax.experimental import pallas as pl
from jax.experimental.pallas import tpu as pltpu


# ------------------------------ fused kernel -------------------------------

def _make_fused_kernel(num_layers, seq_len, batch_pad, hidden):
    """Builds the fused (LSTM stack + fc) kernel for static sizes."""
    T, Bp, H = seq_len, batch_pad, hidden
    UNROLL_T = 16  # fully unroll the time loop only for small T

    def kernel(*refs):
        # refs layout: x2d, [wih_l, whh_l, b_l]*L, fc_w, fc_b | out | gi, (hseq)
        x_ref = refs[0]
        lw = refs[1:1 + 3 * num_layers]
        fc_w_ref = refs[1 + 3 * num_layers]
        fc_b_ref = refs[2 + 3 * num_layers]
        out_ref = refs[3 + 3 * num_layers]
        gi_ref = refs[4 + 3 * num_layers]                 # (T*Bp, 4H) f32 scratch
        hseq_ref = refs[5 + 3 * num_layers] if num_layers > 1 else None  # (T*Bp, H)

        def run_layer(layer, src_bf16):
            wih = lw[3 * layer][...]          # (D_in, 4H) bf16
            whh = lw[3 * layer + 1][...]      # (H, 4H)    bf16
            b = lw[3 * layer + 2][...]        # (1, 4H)    f32  (b_ih + b_hh)
            last = (layer + 1 == num_layers)

            # Batched input projection for ALL timesteps: one MXU matmul,
            # bias add hoisted, result parked in VMEM scratch (tile-aligned).
            gi_ref[...] = (
                jnp.dot(src_bf16, wih, preferred_element_type=jnp.float32) + b)

            def step(off, h, c):
                # off is a multiple of Bp (itself a multiple of 8): aligned read.
                gates = gi_ref[pl.ds(off, Bp), :] + jnp.dot(
                    h.astype(jnp.bfloat16), whh,
                    preferred_element_type=jnp.float32)            # (Bp, 4H) f32
                if H % 128 == 0:
                    # lane-aligned per-gate activations (half the EUP work)
                    s_if = jax.nn.sigmoid(gates[:, :2 * H])
                    i_g, f_g = s_if[:, :H], s_if[:, H:]
                    g_g = jnp.tanh(gates[:, 2 * H:3 * H])
                    o_g = jax.nn.sigmoid(gates[:, 3 * H:])
                else:
                    # H < 128: whole-vreg activations avoid sub-lane relayouts
                    sig = jax.nn.sigmoid(gates)
                    tnh = jnp.tanh(gates)
                    i_g, f_g, o_g = sig[:, :H], sig[:, H:2 * H], sig[:, 3 * H:]
                    g_g = tnh[:, 2 * H:3 * H]
                c = f_g * c + i_g * g_g
                h = o_g * jnp.tanh(c)
                if not last:
                    hseq_ref[pl.ds(off, Bp), :] = h
                return h, c

            h = jnp.zeros((Bp, H), jnp.float32)
            c = jnp.zeros((Bp, H), jnp.float32)
            if T <= UNROLL_T:
                for t in range(T):                       # static, aligned offsets
                    h, c = step(t * Bp, h, c)
            else:
                def body(t, carry):
                    off = pl.multiple_of(t * Bp, Bp)
                    return step(off, *carry)
                h, c = jax.lax.fori_loop(0, T, body, (h, c), unroll=4)
            return h

        src = x_ref[...]                                  # (T*Bp, D) bf16
        h_last = None
        for layer in range(num_layers):
            h_last = run_layer(layer, src)
            if layer + 1 < num_layers:
                src = hseq_ref[...].astype(jnp.bfloat16)  # next layer's inputs

        # Final linear layer on the last timestep's hidden state of last layer.
        out_ref[...] = (
            jnp.dot(h_last.astype(jnp.bfloat16), fc_w_ref[...],
                    preferred_element_type=jnp.float32) + fc_b_ref[...]
        ).astype(out_ref.dtype)

    return kernel


# --------------------------------- wrapper ---------------------------------

@functools.partial(jax.jit, static_argnames=("num_layers",))
def lstm_model_forward(x_btd, params, num_layers):
    """Mirrors LSTMModel.forward. x_btd: (B, T, input_size), batch_first."""
    B, T, D = x_btd.shape
    H = params["lstm"][0][1].shape[0]        # whh_t: (H, 4H)
    O = params["fc_w_t"].shape[1]
    Bp = ((B + 7) // 8) * 8                  # pad batch to f32 sublane tile

    # batch_first (B,T,D) -> time-major, batch padded, flattened (T*Bp, D) bf16.
    x_tbd = jnp.transpose(x_btd.astype(jnp.float32), (1, 0, 2))
    x_tbd = jnp.pad(x_tbd, ((0, 0), (0, Bp - B), (0, 0)))
    x2d = x_tbd.reshape(T * Bp, D).astype(jnp.bfloat16)

    flat = [x2d]
    for layer in range(num_layers):
        wih_t, whh_t, b = params["lstm"][layer]
        flat += [wih_t.astype(jnp.bfloat16), whh_t.astype(jnp.bfloat16),
                 b.astype(jnp.float32)]
    flat += [params["fc_w_t"].astype(jnp.bfloat16),
             params["fc_b"].astype(jnp.float32)]

    scratch = [pltpu.VMEM((T * Bp, 4 * H), jnp.float32)]      # gi (all timesteps)
    if num_layers > 1:
        scratch.append(pltpu.VMEM((T * Bp, H), jnp.float32))  # per-step h outputs

    # Explicit scoped-VMEM budget from actual operand + scratch footprint.
    total_bytes = sum(int(a.size) * a.dtype.itemsize for a in flat)
    total_bytes += Bp * O * 4                      # output
    total_bytes += T * Bp * 4 * H * 4              # gi scratch
    if num_layers > 1:
        total_bytes += T * Bp * H * 4              # hseq scratch
    vmem_limit = int(min(max(2 * total_bytes + (8 << 20), 16 << 20), 64 << 20))

    kernel = _make_fused_kernel(num_layers, T, Bp, H)
    out = pl.pallas_call(
        kernel,
        out_shape=jax.ShapeDtypeStruct((Bp, O), jnp.float32),
        in_specs=[pl.BlockSpec(memory_space=pltpu.MemorySpace.VMEM)] * len(flat),
        out_specs=pl.BlockSpec(memory_space=pltpu.MemorySpace.VMEM),
        scratch_shapes=scratch,
        compiler_params=pltpu.CompilerParams(vmem_limit_bytes=vmem_limit),
    )(*flat)
    return out[:B]


# ----------------------------- params / reference --------------------------

def init_params(key, input_size, hidden_size, num_layers, output_size):
    """Deterministic synthetic params, PyTorch-style uniform(-1/sqrt(H), 1/sqrt(H))."""
    k = 1.0 / jnp.sqrt(jnp.float32(hidden_size))
    lstm_params = []
    for layer in range(num_layers):
        d_in = input_size if layer == 0 else hidden_size
        key, k1, k2, k3, k4 = jax.random.split(key, 5)
        w_ih = jax.random.uniform(k1, (4 * hidden_size, d_in), jnp.float32, -k, k)
        w_hh = jax.random.uniform(k2, (4 * hidden_size, hidden_size), jnp.float32, -k, k)
        b_ih = jax.random.uniform(k3, (4 * hidden_size,), jnp.float32, -k, k)
        b_hh = jax.random.uniform(k4, (4 * hidden_size,), jnp.float32, -k, k)
        # Pre-transpose weights; fuse the two biases.
        lstm_params.append((w_ih.T, w_hh.T, (b_ih + b_hh)[None, :]))
    key, k5, k6 = jax.random.split(key, 3)
    w_fc = jax.random.uniform(k5, (output_size, hidden_size), jnp.float32, -k, k)
    b_fc = jax.random.uniform(k6, (output_size,), jnp.float32, -k, k)
    return {"lstm": lstm_params, "fc_w_t": w_fc.T, "fc_b": b_fc[None, :]}


def _reference_forward(x_btd, params, num_layers, operand_dtype=jnp.float32):
    """Pure-JAX reference (PyTorch eval semantics). operand_dtype=bf16 reproduces
    the kernel's matmul-operand rounding (f32 accumulation)."""
    def mm(a, b):
        return jnp.dot(a.astype(operand_dtype), b.astype(operand_dtype),
                       preferred_element_type=jnp.float32)

    x = x_btd.astype(jnp.float32)
    B, T, _ = x.shape
    seq = x
    for layer in range(num_layers):
        w_ih_t, w_hh_t, b = params["lstm"][layer]
        H = w_hh_t.shape[0]
        h = jnp.zeros((B, H), jnp.float32)
        c = jnp.zeros((B, H), jnp.float32)
        outs = []
        for t in range(T):
            gates = mm(seq[:, t, :], w_ih_t) + mm(h, w_hh_t) + b
            i = jax.nn.sigmoid(gates[:, :H])
            f = jax.nn.sigmoid(gates[:, H:2 * H])
            g = jnp.tanh(gates[:, 2 * H:3 * H])
            o = jax.nn.sigmoid(gates[:, 3 * H:])
            c = f * c + i * g
            h = o * jnp.tanh(c)
            outs.append(h)
        seq = jnp.stack(outs, axis=1)
    return mm(seq[:, -1, :], params["fc_w_t"]) + params["fc_b"]


if __name__ == "__main__":
    # Small shapes consistent with LSTMModel's forward.
    batch, seq_len = 2, 8
    input_size, hidden_size, num_layers, output_size = 4, 32, 2, 4

    key = jax.random.PRNGKey(0)
    key, xk = jax.random.split(key)
    x = jax.random.normal(xk, (batch, seq_len, input_size), jnp.float32)

    params = init_params(key, input_size, hidden_size, num_layers, output_size)

    out = lstm_model_forward(x, params, num_layers)
    jax.block_until_ready(out)
    assert out.shape == (batch, output_size), out.shape

    # Tight check vs. a reference using the same bf16 matmul-operand rounding.
    ref_q = _reference_forward(x, params, num_layers, operand_dtype=jnp.bfloat16)
    assert jnp.allclose(out, ref_q, rtol=1e-2, atol=1e-2), (out, ref_q)

    # PyTorch-parity (full f32) reference; looser tolerance covers bf16 weights.
    ref_f32 = _reference_forward(x, params, num_layers)
    assert jnp.allclose(out, ref_f32, rtol=5e-2, atol=5e-2), (out, ref_f32)

    print("KERNEL_OK")
</pallas_src>

<mosaic_0001>
module attributes {stable_mosaic.version = 11 : i64} {
  func.func @kernel(%arg0: memref<64x4xbf16, #tpu.memory_space<vmem>>, %arg1: memref<4x128xbf16, #tpu.memory_space<vmem>>, %arg2: memref<32x128xbf16, #tpu.memory_space<vmem>>, %arg3: memref<1x128xf32, #tpu.memory_space<vmem>>, %arg4: memref<32x128xbf16, #tpu.memory_space<vmem>>, %arg5: memref<32x128xbf16, #tpu.memory_space<vmem>>, %arg6: memref<1x128xf32, #tpu.memory_space<vmem>>, %arg7: memref<32x4xbf16, #tpu.memory_space<vmem>>, %arg8: memref<1x4xf32, #tpu.memory_space<vmem>>, %arg9: memref<8x4xf32, #tpu.memory_space<vmem>>, %arg10: memref<64x128xf32, #tpu.memory_space<vmem>>, %arg11: memref<64x32xf32, #tpu.memory_space<vmem>>) attributes {dimension_semantics = [], scalar_prefetch = 0 : i64, scratch_operands = 2 : i64, tpu.core_type = #tpu.core_type<tc>} {
    %c0 = arith.constant 0 : index
    %c0_0 = arith.constant 0 : index
    %0 = vector.load %arg0[%c0, %c0_0] : memref<64x4xbf16, #tpu.memory_space<vmem>>, vector<64x4xbf16>
    %c0_1 = arith.constant 0 : index
    %c0_2 = arith.constant 0 : index
    %1 = vector.load %arg1[%c0_1, %c0_2] : memref<4x128xbf16, #tpu.memory_space<vmem>>, vector<4x128xbf16>
    %c0_3 = arith.constant 0 : index
    %c0_4 = arith.constant 0 : index
    %2 = vector.load %arg2[%c0_3, %c0_4] : memref<32x128xbf16, #tpu.memory_space<vmem>>, vector<32x128xbf16>
    %c0_5 = arith.constant 0 : index
    %c0_6 = arith.constant 0 : index
    %3 = vector.load %arg3[%c0_5, %c0_6] : memref<1x128xf32, #tpu.memory_space<vmem>>, vector<1x128xf32>
    %cst = arith.constant dense<0.000000e+00> : vector<64x128xf32>
    %4 = tpu.matmul %0, %1, %cst {dimension_numbers = #tpu.dot_dimension_numbers<[1], [0], [0], [1], [0, 0, 1, 1], [], []>} : vector<64x4xbf16>, vector<4x128xbf16>, vector<64x128xf32> -> vector<64x128xf32>
    %5 = vector.broadcast %3 : vector<1x128xf32> to vector<64x128xf32>
    %6 = arith.addf %4, %5 : vector<64x128xf32>
    %c0_7 = arith.constant 0 : index
    %c0_8 = arith.constant 0 : index
    %7 = vector.load %arg10[%c0_7, %c0_8] : memref<64x128xf32, #tpu.memory_space<vmem>>, vector<64x128xf32>
    tpu.vector_store %arg10[%c0_7, %c0_8], %6 {strides = array<i32>} : memref<64x128xf32, #tpu.memory_space<vmem>>, vector<64x128xf32>,
    %cst_9 = arith.constant 0.000000e+00 : f32
    %8 = vector.broadcast %cst_9 : f32 to vector<8x32xf32>
    %cst_10 = arith.constant 0.000000e+00 : f32
    %9 = vector.broadcast %cst_10 : f32 to vector<8x32xf32>
    %c0_11 = arith.constant 0 : index
    %c0_12 = arith.constant 0 : index
    %10 = vector.load %arg10[%c0_11, %c0_12] : memref<64x128xf32, #tpu.memory_space<vmem>>, vector<8x128xf32>
    %11 = arith.truncf %8 : vector<8x32xf32> to vector<8x32xbf16>
    %cst_13 = arith.constant dense<0.000000e+00> : vector<8x128xf32>
    %12 = tpu.matmul %11, %2, %cst_13 {dimension_numbers = #tpu.dot_dimension_numbers<[1], [0], [0], [1], [0, 0, 1, 1], [], []>} : vector<8x32xbf16>, vector<32x128xbf16>, vector<8x128xf32> -> vector<8x128xf32>
    %13 = arith.addf %10, %12 : vector<8x128xf32>
    %14 = arith.negf %13 : vector<8x128xf32>
    %15 = math.exp %14 : vector<8x128xf32>
    %cst_14 = arith.constant 1.000000e+00 : f32
    %16 = vector.broadcast %cst_14 : f32 to vector<8x128xf32>
    %17 = arith.addf %16, %15 : vector<8x128xf32>
    %18 = arith.divf %16, %17 : vector<8x128xf32>
    %19 = math.tanh %13 : vector<8x128xf32>
    %20 = vector.extract_strided_slice %18 {offsets = [0, 0], sizes = [8, 32], strides = [1, 1]} : vector<8x128xf32> to vector<8x32xf32>
    %21 = vector.extract_strided_slice %18 {offsets = [0, 32], sizes = [8, 32], strides = [1, 1]} : vector<8x128xf32> to vector<8x32xf32>
    %22 = vector.extract_strided_slice %18 {offsets = [0, 96], sizes = [8, 32], strides = [1, 1]} : vector<8x128xf32> to vector<8x32xf32>
    %23 = vector.extract_strided_slice %19 {offsets = [0, 64], sizes = [8, 32], strides = [1, 1]} : vector<8x128xf32> to vector<8x32xf32>
    %24 = arith.mulf %21, %9 : vector<8x32xf32>
    %25 = arith.mulf %20, %23 : vector<8x32xf32>
    %26 = arith.addf %24, %25 : vector<8x32xf32>
    %27 = math.tanh %26 : vector<8x32xf32>
    %28 = arith.mulf %22, %27 : vector<8x32xf32>
    %c0_15 = arith.constant 0 : index
    %c0_16 = arith.constant 0 : index
    %29 = vector.load %arg11[%c0_15, %c0_16] : memref<64x32xf32, #tpu.memory_space<vmem>>, vector<8x32xf32>
    tpu.vector_store %arg11[%c0_15, %c0_16], %28 {strides = array<i32>} : memref<64x32xf32, #tpu.memory_space<vmem>>, vector<8x32xf32>,
    %c8 = arith.constant 8 : index
    %c0_17 = arith.constant 0 : index
    %30 = vector.load %arg10[%c8, %c0_17] : memref<64x128xf32, #tpu.memory_space<vmem>>, vector<8x128xf32>
    %31 = arith.truncf %28 : vector<8x32xf32> to vector<8x32xbf16>
    %cst_18 = arith.constant dense<0.000000e+00> : vector<8x128xf32>
    %32 = tpu.matmul %31, %2, %cst_18 {dimension_numbers = #tpu.dot_dimension_numbers<[1], [0], [0], [1], [0, 0, 1, 1], [], []>} : vector<8x32xbf16>, vector<32x128xbf16>, vector<8x128xf32> -> vector<8x128xf32>
    %33 = arith.addf %30, %32 : vector<8x128xf32>
    %34 = arith.negf %33 : vector<8x128xf32>
    %35 = math.exp %34 : vector<8x128xf32>
    %cst_19 = arith.constant 1.000000e+00 : f32
    %36 = vector.broadcast %cst_19 : f32 to vector<8x128xf32>
    %37 = arith.addf %36, %35 : vector<8x128xf32>
    %38 = arith.divf %36, %37 : vector<8x128xf32>
    %39 = math.tanh %33 : vector<8x128xf32>
    %40 = vector.extract_strided_slice %38 {offsets = [0, 0], sizes = [8, 32], strides = [1, 1]} : vector<8x128xf32> to vector<8x32xf32>
    %41 = vector.extract_strided_slice %38 {offsets = [0, 32], sizes = [8, 32], strides = [1, 1]} : vector<8x128xf32> to vector<8x32xf32>
    %42 = vector.extract_strided_slice %38 {offsets = [0, 96], sizes = [8, 32], strides = [1, 1]} : vector<8x128xf32> to vector<8x32xf32>
    %43 = vector.extract_strided_slice %39 {offsets = [0, 64], sizes = [8, 32], strides = [1, 1]} : vector<8x128xf32> to vector<8x32xf32>
    %44 = arith.mulf %41, %26 : vector<8x32xf32>
    %45 = arith.mulf %40, %43 : vector<8x32xf32>
    %46 = arith.addf %44, %45 : vector<8x32xf32>
    %47 = math.tanh %46 : vector<8x32xf32>
    %48 = arith.mulf %42, %47 : vector<8x32xf32>
    %c8_20 = arith.constant 8 : index
    %c0_21 = arith.constant 0 : index
    %49 = vector.load %arg11[%c8_20, %c0_21] : memref<64x32xf32, #tpu.memory_space<vmem>>, vector<8x32xf32>
    tpu.vector_store %arg11[%c8_20, %c0_21], %48 {strides = array<i32>} : memref<64x32xf32, #tpu.memory_space<vmem>>, vector<8x32xf32>,
    %c16 = arith.constant 16 : index
    %c0_22 = arith.constant 0 : index
    %50 = vector.load %arg10[%c16, %c0_22] : memref<64x128xf32, #tpu.memory_space<vmem>>, vector<8x128xf32>
    %51 = arith.truncf %48 : vector<8x32xf32> to vector<8x32xbf16>
    %cst_23 = arith.constant dense<0.000000e+00> : vector<8x128xf32>
    %52 = tpu.matmul %51, %2, %cst_23 {dimension_numbers = #tpu.dot_dimension_numbers<[1], [0], [0], [1], [0, 0, 1, 1], [], []>} : vector<8x32xbf16>, vector<32x128xbf16>, vector<8x128xf32> -> vector<8x128xf32>
    %53 = arith.addf %50, %52 : vector<8x128xf32>
    %54 = arith.negf %53 : vector<8x128xf32>
    %55 = math.exp %54 : vector<8x128xf32>
    %cst_24 = arith.constant 1.000000e+00 : f32
    %56 = vector.broadcast %cst_24 : f32 to vector<8x128xf32>
    %57 = arith.addf %56, %55 : vector<8x128xf32>
    %58 = arith.divf %56, %57 : vector<8x128xf32>
    %59 = math.tanh %53 : vector<8x128xf32>
    %60 = vector.extract_strided_slice %58 {offsets = [0, 0], sizes = [8, 32], strides = [1, 1]} : vector<8x128xf32> to vector<8x32xf32>
    %61 = vector.extract_strided_slice %58 {offsets = [0, 32], sizes = [8, 32], strides = [1, 1]} : vector<8x128xf32> to vector<8x32xf32>
    %62 = vector.extract_strided_slice %58 {offsets = [0, 96], sizes = [8, 32], strides = [1, 1]} : vector<8x128xf32> to vector<8x32xf32>
    %63 = vector.extract_strided_slice %59 {offsets = [0, 64], sizes = [8, 32], strides = [1, 1]} : vector<8x128xf32> to vector<8x32xf32>
    %64 = arith.mulf %61, %46 : vector<8x32xf32>
    %65 = arith.mulf %60, %63 : vector<8x32xf32>
    %66 = arith.addf %64, %65 : vector<8x32xf32>
    %67 = math.tanh %66 : vector<8x32xf32>
    %68 = arith.mulf %62, %67 : vector<8x32xf32>
    %c16_25 = arith.constant 16 : index
    %c0_26 = arith.constant 0 : index
    %69 = vector.load %arg11[%c16_25, %c0_26] : memref<64x32xf32, #tpu.memory_space<vmem>>, vector<8x32xf32>
    tpu.vector_store %arg11[%c16_25, %c0_26], %68 {strides = array<i32>} : memref<64x32xf32, #tpu.memory_space<vmem>>, vector<8x32xf32>,
    %c24 = arith.constant 24 : index
    %c0_27 = arith.constant 0 : index
    %70 = vector.load %arg10[%c24, %c0_27] : memref<64x128xf32, #tpu.memory_space<vmem>>, vector<8x128xf32>
    %71 = arith.truncf %68 : vector<8x32xf32> to vector<8x32xbf16>
    %cst_28 = arith.constant dense<0.000000e+00> : vector<8x128xf32>
    %72 = tpu.matmul %71, %2, %cst_28 {dimension_numbers = #tpu.dot_dimension_numbers<[1], [0], [0], [1], [0, 0, 1, 1], [], []>} : vector<8x32xbf16>, vector<32x128xbf16>, vector<8x128xf32> -> vector<8x128xf32>
    %73 = arith.addf %70, %72 : vector<8x128xf32>
    %74 = arith.negf %73 : vector<8x128xf32>
    %75 = math.exp %74 : vector<8x128xf32>
    %cst_29 = arith.constant 1.000000e+00 : f32
    %76 = vector.broadcast %cst_29 : f32 to vector<8x128xf32>
    %77 = arith.addf %76, %75 : vector<8x128xf32>
    %78 = arith.divf %76, %77 : vector<8x128xf32>
    %79 = math.tanh %73 : vector<8x128xf32>
    %80 = vector.extract_strided_slice %78 {offsets = [0, 0], sizes = [8, 32], strides = [1, 1]} : vector<8x128xf32> to vector<8x32xf32>
    %81 = vector.extract_strided_slice %78 {offsets = [0, 32], sizes = [8, 32], strides = [1, 1]} : vector<8x128xf32> to vector<8x32xf32>
    %82 = vector.extract_strided_slice %78 {offsets = [0, 96], sizes = [8, 32], strides = [1, 1]} : vector<8x128xf32> to vector<8x32xf32>
    %83 = vector.extract_strided_slice %79 {offsets = [0, 64], sizes = [8, 32], strides = [1, 1]} : vector<8x128xf32> to vector<8x32xf32>
    %84 = arith.mulf %81, %66 : vector<8x32xf32>
    %85 = arith.mulf %80, %83 : vector<8x32xf32>
    %86 = arith.addf %84, %85 : vector<8x32xf32>
    %87 = math.tanh %86 : vector<8x32xf32>
    %88 = arith.mulf %82, %87 : vector<8x32xf32>
    %c24_30 = arith.constant 24 : index
    %c0_31 = arith.constant 0 : index
    %89 = vector.load %arg11[%c24_30, %c0_31] : memref<64x32xf32, #tpu.memory_space<vmem>>, vector<8x32xf32>
    tpu.vector_store %arg11[%c24_30, %c0_31], %88 {strides = array<i32>} : memref<64x32xf32, #tpu.memory_space<vmem>>, vector<8x32xf32>,
    %c32 = arith.constant 32 : index
    %c0_32 = arith.constant 0 : index
    %90 = vector.load %arg10[%c32, %c0_32] : memref<64x128xf32, #tpu.memory_space<vmem>>, vector<8x128xf32>
    %91 = arith.truncf %88 : vector<8x32xf32> to vector<8x32xbf16>
    %cst_33 = arith.constant dense<0.000000e+00> : vector<8x128xf32>
    %92 = tpu.matmul %91, %2, %cst_33 {dimension_numbers = #tpu.dot_dimension_numbers<[1], [0], [0], [1], [0, 0, 1, 1], [], []>} : vector<8x32xbf16>, vector<32x128xbf16>, vector<8x128xf32> -> vector<8x128xf32>
    %93 = arith.addf %90, %92 : vector<8x128xf32>
    %94 = arith.negf %93 : vector<8x128xf32>
    %95 = math.exp %94 : vector<8x128xf32>
    %cst_34 = arith.constant 1.000000e+00 : f32
    %96 = vector.broadcast %cst_34 : f32 to vector<8x128xf32>
    %97 = arith.addf %96, %95 : vector<8x128xf32>
    %98 = arith.divf %96, %97 : vector<8x128xf32>
    %99 = math.tanh %93 : vector<8x128xf32>
    %100 = vector.extract_strided_slice %98 {offsets = [0, 0], sizes = [8, 32], strides = [1, 1]} : vector<8x128xf32> to vector<8x32xf32>
    %101 = vector.extract_strided_slice %98 {offsets = [0, 32], sizes = [8, 32], strides = [1, 1]} : vector<8x128xf32> to vector<8x32xf32>
    %102 = vector.extract_strided_slice %98 {offsets = [0, 96], sizes = [8, 32], strides = [1, 1]} : vector<8x128xf32> to vector<8x32xf32>
    %103 = vector.extract_strided_slice %99 {offsets = [0, 64], sizes = [8, 32], strides = [1, 1]} : vector<8x128xf32> to vector<8x32xf32>
    %104 = arith.mulf %101, %86 : vector<8x32xf32>
    %105 = arith.mulf %100, %103 : vector<8x32xf32>
    %106 = arith.addf %104, %105 : vector<8x32xf32>
    %107 = math.tanh %106 : vector<8x32xf32>
    %108 = arith.mulf %102, %107 : vector<8x32xf32>
    %c32_35 = arith.constant 32 : index
    %c0_36 = arith.constant 0 : index
    %109 = vector.load %arg11[%c32_35, %c0_36] : memref<64x32xf32, #tpu.memory_space<vmem>>, vector<8x32xf32>
    tpu.vector_store %arg11[%c32_35, %c0_36], %108 {strides = array<i32>} : memref<64x32xf32, #tpu.memory_space<vmem>>, vector<8x32xf32>,
    %c40 = arith.constant 40 : index
    %c0_37 = arith.constant 0 : index
    %110 = vector.load %arg10[%c40, %c0_37] : memref<64x128xf32, #tpu.memory_space<vmem>>, vector<8x128xf32>
    %111 = arith.truncf %108 : vector<8x32xf32> to vector<8x32xbf16>
    %cst_38 = arith.constant dense<0.000000e+00> : vector<8x128xf32>
    %112 = tpu.matmul %111, %2, %cst_38 {dimension_numbers = #tpu.dot_dimension_numbers<[1], [0], [0], [1], [0, 0, 1, 1], [], []>} : vector<8x32xbf16>, vector<32x128xbf16>, vector<8x128xf32> -> vector<8x128xf32>
    %113 = arith.addf %110, %112 : vector<8x128xf32>
    %114 = arith.negf %113 : vector<8x128xf32>
    %115 = math.exp %114 : vector<8x128xf32>
    %cst_39 = arith.constant 1.000000e+00 : f32
    %116 = vector.broadcast %cst_39 : f32 to vector<8x128xf32>
    %117 = arith.addf %116, %115 : vector<8x128xf32>
    %118 = arith.divf %116, %117 : vector<8x128xf32>
    %119 = math.tanh %113 : vector<8x128xf32>
    %120 = vector.extract_strided_slice %118 {offsets = [0, 0], sizes = [8, 32], strides = [1, 1]} : vector<8x128xf32> to vector<8x32xf32>
    %121 = vector.extract_strided_slice %118 {offsets = [0, 32], sizes = [8, 32], strides = [1, 1]} : vector<8x128xf32> to vector<8x32xf32>
    %122 = vector.extract_strided_slice %118 {offsets = [0, 96], sizes = [8, 32], strides = [1, 1]} : vector<8x128xf32> to vector<8x32xf32>
    %123 = vector.extract_strided_slice %119 {offsets = [0, 64], sizes = [8, 32], strides = [1, 1]} : vector<8x128xf32> to vector<8x32xf32>
    %124 = arith.mulf %121, %106 : vector<8x32xf32>
    %125 = arith.mulf %120, %123 : vector<8x32xf32>
    %126 = arith.addf %124, %125 : vector<8x32xf32>
    %127 = math.tanh %126 : vector<8x32xf32>
    %128 = arith.mulf %122, %127 : vector<8x32xf32>
    %c40_40 = arith.constant 40 : index
    %c0_41 = arith.constant 0 : index
    %129 = vector.load %arg11[%c40_40, %c0_41] : memref<64x32xf32, #tpu.memory_space<vmem>>, vector<8x32xf32>
    tpu.vector_store %arg11[%c40_40, %c0_41], %128 {strides = array<i32>} : memref<64x32xf32, #tpu.memory_space<vmem>>, vector<8x32xf32>,
    %c48 = arith.constant 48 : index
    %c0_42 = arith.constant 0 : index
    %130 = vector.load %arg10[%c48, %c0_42] : memref<64x128xf32, #tpu.memory_space<vmem>>, vector<8x128xf32>
    %131 = arith.truncf %128 : vector<8x32xf32> to vector<8x32xbf16>
    %cst_43 = arith.constant dense<0.000000e+00> : vector<8x128xf32>
    %132 = tpu.matmul %131, %2, %cst_43 {dimension_numbers = #tpu.dot_dimension_numbers<[1], [0], [0], [1], [0, 0, 1, 1], [], []>} : vector<8x32xbf16>, vector<32x128xbf16>, vector<8x128xf32> -> vector<8x128xf32>
    %133 = arith.addf %130, %132 : vector<8x128xf32>
    %134 = arith.negf %133 : vector<8x128xf32>
    %135 = math.exp %134 : vector<8x128xf32>
    %cst_44 = arith.constant 1.000000e+00 : f32
    %136 = vector.broadcast %cst_44 : f32 to vector<8x128xf32>
    %137 = arith.addf %136, %135 : vector<8x128xf32>
    %138 = arith.divf %136, %137 : vector<8x128xf32>
    %139 = math.tanh %133 : vector<8x128xf32>
    %140 = vector.extract_strided_slice %138 {offsets = [0, 0], sizes = [8, 32], strides = [1, 1]} : vector<8x128xf32> to vector<8x32xf32>
    %141 = vector.extract_strided_slice %138 {offsets = [0, 32], sizes = [8, 32], strides = [1, 1]} : vector<8x128xf32> to vector<8x32xf32>
    %142 = vector.extract_strided_slice %138 {offsets = [0, 96], sizes = [8, 32], strides = [1, 1]} : vector<8x128xf32> to vector<8x32xf32>
    %143 = vector.extract_strided_slice %139 {offsets = [0, 64], sizes = [8, 32], strides = [1, 1]} : vector<8x128xf32> to vector<8x32xf32>
    %144 = arith.mulf %141, %126 : vector<8x32xf32>
    %145 = arith.mulf %140, %143 : vector<8x32xf32>
    %146 = arith.addf %144, %145 : vector<8x32xf32>
    %147 = math.tanh %146 : vector<8x32xf32>
    %148 = arith.mulf %142, %147 : vector<8x32xf32>
    %c48_45 = arith.constant 48 : index
    %c0_46 = arith.constant 0 : index
    %149 = vector.load %arg11[%c48_45, %c0_46] : memref<64x32xf32, #tpu.memory_space<vmem>>, vector<8x32xf32>
    tpu.vector_store %arg11[%c48_45, %c0_46], %148 {strides = array<i32>} : memref<64x32xf32, #tpu.memory_space<vmem>>, vector<8x32xf32>,
    %c56 = arith.constant 56 : index
    %c0_47 = arith.constant 0 : index
    %150 = vector.load %arg10[%c56, %c0_47] : memref<64x128xf32, #tpu.memory_space<vmem>>, vector<8x128xf32>
    %151 = arith.truncf %148 : vector<8x32xf32> to vector<8x32xbf16>
    %cst_48 = arith.constant dense<0.000000e+00> : vector<8x128xf32>
    %152 = tpu.matmul %151, %2, %cst_48 {dimension_numbers = #tpu.dot_dimension_numbers<[1], [0], [0], [1], [0, 0, 1, 1], [], []>} : vector<8x32xbf16>, vector<32x128xbf16>, vector<8x128xf32> -> vector<8x128xf32>
    %153 = arith.addf %150, %152 : vector<8x128xf32>
    %154 = arith.negf %153 : vector<8x128xf32>
    %155 = math.exp %154 : vector<8x128xf32>
    %cst_49 = arith.constant 1.000000e+00 : f32
    %156 = vector.broadcast %cst_49 : f32 to vector<8x128xf32>
    %157 = arith.addf %156, %155 : vector<8x128xf32>
    %158 = arith.divf %156, %157 : vector<8x128xf32>
    %159 = math.tanh %153 : vector<8x128xf32>
    %160 = vector.extract_strided_slice %158 {offsets = [0, 0], sizes = [8, 32], strides = [1, 1]} : vector<8x128xf32> to vector<8x32xf32>
    %161 = vector.extract_strided_slice %158 {offsets = [0, 32], sizes = [8, 32], strides = [1, 1]} : vector<8x128xf32> to vector<8x32xf32>
    %162 = vector.extract_strided_slice %158 {offsets = [0, 96], sizes = [8, 32], strides = [1, 1]} : vector<8x128xf32> to vector<8x32xf32>
    %163 = vector.extract_strided_slice %159 {offsets = [0, 64], sizes = [8, 32], strides = [1, 1]} : vector<8x128xf32> to vector<8x32xf32>
    %164 = arith.mulf %161, %146 : vector<8x32xf32>
    %165 = arith.mulf %160, %163 : vector<8x32xf32>
    %166 = arith.addf %164, %165 : vector<8x32xf32>
    %167 = math.tanh %166 : vector<8x32xf32>
    %168 = arith.mulf %162, %167 : vector<8x32xf32>
    %c56_50 = arith.constant 56 : index
    %c0_51 = arith.constant 0 : index
    %169 = vector.load %arg11[%c56_50, %c0_51] : memref<64x32xf32, #tpu.memory_space<vmem>>, vector<8x32xf32>
    tpu.vector_store %arg11[%c56_50, %c0_51], %168 {strides = array<i32>} : memref<64x32xf32, #tpu.memory_space<vmem>>, vector<8x32xf32>,
    %c0_52 = arith.constant 0 : index
    %c0_53 = arith.constant 0 : index
    %170 = vector.load %arg11[%c0_52, %c0_53] : memref<64x32xf32, #tpu.memory_space<vmem>>, vector<64x32xf32>
    %171 = arith.truncf %170 : vector<64x32xf32> to vector<64x32xbf16>
    %c0_54 = arith.constant 0 : index
    %c0_55 = arith.constant 0 : index
    %172 = vector.load %arg4[%c0_54, %c0_55] : memref<32x128xbf16, #tpu.memory_space<vmem>>, vector<32x128xbf16>
    %c0_56 = arith.constant 0 : index
    %c0_57 = arith.constant 0 : index
    %173 = vector.load %arg5[%c0_56, %c0_57] : memref<32x128xbf16, #tpu.memory_space<vmem>>, vector<32x128xbf16>
    %c0_58 = arith.constant 0 : index
    %c0_59 = arith.constant 0 : index
    %174 = vector.load %arg6[%c0_58, %c0_59] : memref<1x128xf32, #tpu.memory_space<vmem>>, vector<1x128xf32>
    %cst_60 = arith.constant dense<0.000000e+00> : vector<64x128xf32>
    %175 = tpu.matmul %171, %172, %cst_60 {dimension_numbers = #tpu.dot_dimension_numbers<[1], [0], [0], [1], [0, 0, 1, 1], [], []>} : vector<64x32xbf16>, vector<32x128xbf16>, vector<64x128xf32> -> vector<64x128xf32>
    %176 = vector.broadcast %174 : vector<1x128xf32> to vector<64x128xf32>
    %177 = arith.addf %175, %176 : vector<64x128xf32>
    %c0_61 = arith.constant 0 : index
    %c0_62 = arith.constant 0 : index
    %178 = vector.load %arg10[%c0_61, %c0_62] : memref<64x128xf32, #tpu.memory_space<vmem>>, vector<64x128xf32>
    tpu.vector_store %arg10[%c0_61, %c0_62], %177 {strides = array<i32>} : memref<64x128xf32, #tpu.memory_space<vmem>>, vector<64x128xf32>,
    %cst_63 = arith.constant 0.000000e+00 : f32
    %179 = vector.broadcast %cst_63 : f32 to vector<8x32xf32>
    %cst_64 = arith.constant 0.000000e+00 : f32
    %180 = vector.broadcast %cst_64 : f32 to vector<8x32xf32>
    %c0_65 = arith.constant 0 : index
    %c0_66 = arith.constant 0 : index
    %181 = vector.load %arg10[%c0_65, %c0_66] : memref<64x128xf32, #tpu.memory_space<vmem>>, vector<8x128xf32>
    %182 = arith.truncf %179 : vector<8x32xf32> to vector<8x32xbf16>
    %cst_67 = arith.constant dense<0.000000e+00> : vector<8x128xf32>
    %183 = tpu.matmul %182, %173, %cst_67 {dimension_numbers = #tpu.dot_dimension_numbers<[1], [0], [0], [1], [0, 0, 1, 1], [], []>} : vector<8x32xbf16>, vector<32x128xbf16>, vector<8x128xf32> -> vector<8x128xf32>
    %184 = arith.addf %181, %183 : vector<8x128xf32>
    %185 = arith.negf %184 : vector<8x128xf32>
    %186 = math.exp %185 : vector<8x128xf32>
    %cst_68 = arith.constant 1.000000e+00 : f32
    %187 = vector.broadcast %cst_68 : f32 to vector<8x128xf32>
    %188 = arith.addf %187, %186 : vector<8x128xf32>
    %189 = arith.divf %187, %188 : vector<8x128xf32>
    %190 = math.tanh %184 : vector<8x128xf32>
    %191 = vector.extract_strided_slice %189 {offsets = [0, 0], sizes = [8, 32], strides = [1, 1]} : vector<8x128xf32> to vector<8x32xf32>
    %192 = vector.extract_strided_slice %189 {offsets = [0, 32], sizes = [8, 32], strides = [1, 1]} : vector<8x128xf32> to vector<8x32xf32>
    %193 = vector.extract_strided_slice %189 {offsets = [0, 96], sizes = [8, 32], strides = [1, 1]} : vector<8x128xf32> to vector<8x32xf32>
    %194 = vector.extract_strided_slice %190 {offsets = [0, 64], sizes = [8, 32], strides = [1, 1]} : vector<8x128xf32> to vector<8x32xf32>
    %195 = arith.mulf %192, %180 : vector<8x32xf32>
    %196 = arith.mulf %191, %194 : vector<8x32xf32>
    %197 = arith.addf %195, %196 : vector<8x32xf32>
    %198 = math.tanh %197 : vector<8x32xf32>
    %199 = arith.mulf %193, %198 : vector<8x32xf32>
    %c8_69 = arith.constant 8 : index
    %c0_70 = arith.constant 0 : index
    %200 = vector.load %arg10[%c8_69, %c0_70] : memref<64x128xf32, #tpu.memory_space<vmem>>, vector<8x128xf32>
    %201 = arith.truncf %199 : vector<8x32xf32> to vector<8x32xbf16>
    %cst_71 = arith.constant dense<0.000000e+00> : vector<8x128xf32>
    %202 = tpu.matmul %201, %173, %cst_71 {dimension_numbers = #tpu.dot_dimension_numbers<[1], [0], [0], [1], [0, 0, 1, 1], [], []>} : vector<8x32xbf16>, vector<32x128xbf16>, vector<8x128xf32> -> vector<8x128xf32>
    %203 = arith.addf %200, %202 : vector<8x128xf32>
    %204 = arith.negf %203 : vector<8x128xf32>
    %205 = math.exp %204 : vector<8x128xf32>
    %cst_72 = arith.constant 1.000000e+00 : f32
    %206 = vector.broadcast %cst_72 : f32 to vector<8x128xf32>
    %207 = arith.addf %206, %205 : vector<8x128xf32>
    %208 = arith.divf %206, %207 : vector<8x128xf32>
    %209 = math.tanh %203 : vector<8x128xf32>
    %210 = vector.extract_strided_slice %208 {offsets = [0, 0], sizes = [8, 32], strides = [1, 1]} : vector<8x128xf32> to vector<8x32xf32>
    %211 = vector.extract_strided_slice %208 {offsets = [0, 32], sizes = [8, 32], strides = [1, 1]} : vector<8x128xf32> to vector<8x32xf32>
    %212 = vector.extract_strided_slice %208 {offsets = [0, 96], sizes = [8, 32], strides = [1, 1]} : vector<8x128xf32> to vector<8x32xf32>
    %213 = vector.extract_strided_slice %209 {offsets = [0, 64], sizes = [8, 32], strides = [1, 1]} : vector<8x128xf32> to vector<8x32xf32>
    %214 = arith.mulf %211, %197 : vector<8x32xf32>
    %215 = arith.mulf %210, %213 : vector<8x32xf32>
    %216 = arith.addf %214, %215 : vector<8x32xf32>
    %217 = math.tanh %216 : vector<8x32xf32>
    %218 = arith.mulf %212, %217 : vector<8x32xf32>
    %c16_73 = arith.constant 16 : index
    %c0_74 = arith.constant 0 : index
    %219 = vector.load %arg10[%c16_73, %c0_74] : memref<64x128xf32, #tpu.memory_space<vmem>>, vector<8x128xf32>
    %220 = arith.truncf %218 : vector<8x32xf32> to vector<8x32xbf16>
    %cst_75 = arith.constant dense<0.000000e+00> : vector<8x128xf32>
    %221 = tpu.matmul %220, %173, %cst_75 {dimension_numbers = #tpu.dot_dimension_numbers<[1], [0], [0], [1], [0, 0, 1, 1], [], []>} : vector<8x32xbf16>, vector<32x128xbf16>, vector<8x128xf32> -> vector<8x128xf32>
    %222 = arith.addf %219, %221 : vector<8x128xf32>
    %223 = arith.negf %222 : vector<8x128xf32>
    %224 = math.exp %223 : vector<8x128xf32>
    %cst_76 = arith.constant 1.000000e+00 : f32
    %225 = vector.broadcast %cst_76 : f32 to vector<8x128xf32>
    %226 = arith.addf %225, %224 : vector<8x128xf32>
    %227 = arith.divf %225, %226 : vector<8x128xf32>
    %228 = math.tanh %222 : vector<8x128xf32>
    %229 = vector.extract_strided_slice %227 {offsets = [0, 0], sizes = [8, 32], strides = [1, 1]} : vector<8x128xf32> to vector<8x32xf32>
    %230 = vector.extract_strided_slice %227 {offsets = [0, 32], sizes = [8, 32], strides = [1, 1]} : vector<8x128xf32> to vector<8x32xf32>
    %231 = vector.extract_strided_slice %227 {offsets = [0, 96], sizes = [8, 32], strides = [1, 1]} : vector<8x128xf32> to vector<8x32xf32>
    %232 = vector.extract_strided_slice %228 {offsets = [0, 64], sizes = [8, 32], strides = [1, 1]} : vector<8x128xf32> to vector<8x32xf32>
    %233 = arith.mulf %230, %216 : vector<8x32xf32>
    %234 = arith.mulf %229, %232 : vector<8x32xf32>
    %235 = arith.addf %233, %234 : vector<8x32xf32>
    %236 = math.tanh %235 : vector<8x32xf32>
    %237 = arith.mulf %231, %236 : vector<8x32xf32>
    %c24_77 = arith.constant 24 : index
    %c0_78 = arith.constant 0 : index
    %238 = vector.load %arg10[%c24_77, %c0_78] : memref<64x128xf32, #tpu.memory_space<vmem>>, vector<8x128xf32>
    %239 = arith.truncf %237 : vector<8x32xf32> to vector<8x32xbf16>
    %cst_79 = arith.constant dense<0.000000e+00> : vector<8x128xf32>
    %240 = tpu.matmul %239, %173, %cst_79 {dimension_numbers = #tpu.dot_dimension_numbers<[1], [0], [0], [1], [0, 0, 1, 1], [], []>} : vector<8x32xbf16>, vector<32x128xbf16>, vector<8x128xf32> -> vector<8x128xf32>
    %241 = arith.addf %238, %240 : vector<8x128xf32>
    %242 = arith.negf %241 : vector<8x128xf32>
    %243 = math.exp %242 : vector<8x128xf32>
    %cst_80 = arith.constant 1.000000e+00 : f32
    %244 = vector.broadcast %cst_80 : f32 to vector<8x128xf32>
    %245 = arith.addf %244, %243 : vector<8x128xf32>
    %246 = arith.divf %244, %245 : vector<8x128xf32>
    %247 = math.tanh %241 : vector<8x128xf32>
    %248 = vector.extract_strided_slice %246 {offsets = [0, 0], sizes = [8, 32], strides = [1, 1]} : vector<8x128xf32> to vector<8x32xf32>
    %249 = vector.extract_strided_slice %246 {offsets = [0, 32], sizes = [8, 32], strides = [1, 1]} : vector<8x128xf32> to vector<8x32xf32>
    %250 = vector.extract_strided_slice %246 {offsets = [0, 96], sizes = [8, 32], strides = [1, 1]} : vector<8x128xf32> to vector<8x32xf32>
    %251 = vector.extract_strided_slice %247 {offsets = [0, 64], sizes = [8, 32], strides = [1, 1]} : vector<8x128xf32> to vector<8x32xf32>
    %252 = arith.mulf %249, %235 : vector<8x32xf32>
    %253 = arith.mulf %248, %251 : vector<8x32xf32>
    %254 = arith.addf %252, %253 : vector<8x32xf32>
    %255 = math.tanh %254 : vector<8x32xf32>
    %256 = arith.mulf %250, %255 : vector<8x32xf32>
    %c32_81 = arith.constant 32 : index
    %c0_82 = arith.constant 0 : index
    %257 = vector.load %arg10[%c32_81, %c0_82] : memref<64x128xf32, #tpu.memory_space<vmem>>, vector<8x128xf32>
    %258 = arith.truncf %256 : vector<8x32xf32> to vector<8x32xbf16>
    %cst_83 = arith.constant dense<0.000000e+00> : vector<8x128xf32>
    %259 = tpu.matmul %258, %173, %cst_83 {dimension_numbers = #tpu.dot_dimension_numbers<[1], [0], [0], [1], [0, 0, 1, 1], [], []>} : vector<8x32xbf16>, vector<32x128xbf16>, vector<8x128xf32> -> vector<8x128xf32>
    %260 = arith.addf %257, %259 : vector<8x128xf32>
    %261 = arith.negf %260 : vector<8x128xf32>
    %262 = math.exp %261 : vector<8x128xf32>
    %cst_84 = arith.constant 1.000000e+00 : f32
    %263 = vector.broadcast %cst_84 : f32 to vector<8x128xf32>
    %264 = arith.addf %263, %262 : vector<8x128xf32>
    %265 = arith.divf %263, %264 : vector<8x128xf32>
    %266 = math.tanh %260 : vector<8x128xf32>
    %267 = vector.extract_strided_slice %265 {offsets = [0, 0], sizes = [8, 32], strides = [1, 1]} : vector<8x128xf32> to vector<8x32xf32>
    %268 = vector.extract_strided_slice %265 {offsets = [0, 32], sizes = [8, 32], strides = [1, 1]} : vector<8x128xf32> to vector<8x32xf32>
    %269 = vector.extract_strided_slice %265 {offsets = [0, 96], sizes = [8, 32], strides = [1, 1]} : vector<8x128xf32> to vector<8x32xf32>
    %270 = vector.extract_strided_slice %266 {offsets = [0, 64], sizes = [8, 32], strides = [1, 1]} : vector<8x128xf32> to vector<8x32xf32>
    %271 = arith.mulf %268, %254 : vector<8x32xf32>
    %272 = arith.mulf %267, %270 : vector<8x32xf32>
    %273 = arith.addf %271, %272 : vector<8x32xf32>
    %274 = math.tanh %273 : vector<8x32xf32>
    %275 = arith.mulf %269, %274 : vector<8x32xf32>
    %c40_85 = arith.constant 40 : index
    %c0_86 = arith.constant 0 : index
    %276 = vector.load %arg10[%c40_85, %c0_86] : memref<64x128xf32, #tpu.memory_space<vmem>>, vector<8x128xf32>
    %277 = arith.truncf %275 : vector<8x32xf32> to vector<8x32xbf16>
    %cst_87 = arith.constant dense<0.000000e+00> : vector<8x128xf32>
    %278 = tpu.matmul %277, %173, %cst_87 {dimension_numbers = #tpu.dot_dimension_numbers<[1], [0], [0], [1], [0, 0, 1, 1], [], []>} : vector<8x32xbf16>, vector<32x128xbf16>, vector<8x128xf32> -> vector<8x128xf32>
    %279 = arith.addf %276, %278 : vector<8x128xf32>
    %280 = arith.negf %279 : vector<8x128xf32>
    %281 = math.exp %280 : vector<8x128xf32>
    %cst_88 = arith.constant 1.000000e+00 : f32
    %282 = vector.broadcast %cst_88 : f32 to vector<8x128xf32>
    %283 = arith.addf %282, %281 : vector<8x128xf32>
    %284 = arith.divf %282, %283 : vector<8x128xf32>
    %285 = math.tanh %279 : vector<8x128xf32>
    %286 = vector.extract_strided_slice %284 {offsets = [0, 0], sizes = [8, 32], strides = [1, 1]} : vector<8x128xf32> to vector<8x32xf32>
    %287 = vector.extract_strided_slice %284 {offsets = [0, 32], sizes = [8, 32], strides = [1, 1]} : vector<8x128xf32> to vector<8x32xf32>
    %288 = vector.extract_strided_slice %284 {offsets = [0, 96], sizes = [8, 32], strides = [1, 1]} : vector<8x128xf32> to vector<8x32xf32>
    %289 = vector.extract_strided_slice %285 {offsets = [0, 64], sizes = [8, 32], strides = [1, 1]} : vector<8x128xf32> to vector<8x32xf32>
    %290 = arith.mulf %287, %273 : vector<8x32xf32>
    %291 = arith.mulf %286, %289 : vector<8x32xf32>
    %292 = arith.addf %290, %291 : vector<8x32xf32>
    %293 = math.tanh %292 : vector<8x32xf32>
    %294 = arith.mulf %288, %293 : vector<8x32xf32>
    %c48_89 = arith.constant 48 : index
    %c0_90 = arith.constant 0 : index
    %295 = vector.load %arg10[%c48_89, %c0_90] : memref<64x128xf32, #tpu.memory_space<vmem>>, vector<8x128xf32>
    %296 = arith.truncf %294 : vector<8x32xf32> to vector<8x32xbf16>
    %cst_91 = arith.constant dense<0.000000e+00> : vector<8x128xf32>
    %297 = tpu.matmul %296, %173, %cst_91 {dimension_numbers = #tpu.dot_dimension_numbers<[1], [0], [0], [1], [0, 0, 1, 1], [], []>} : vector<8x32xbf16>, vector<32x128xbf16>, vector<8x128xf32> -> vector<8x128xf32>
    %298 = arith.addf %295, %297 : vector<8x128xf32>
    %299 = arith.negf %298 : vector<8x128xf32>
    %300 = math.exp %299 : vector<8x128xf32>
    %cst_92 = arith.constant 1.000000e+00 : f32
    %301 = vector.broadcast %cst_92 : f32 to vector<8x128xf32>
    %302 = arith.addf %301, %300 : vector<8x128xf32>
    %303 = arith.divf %301, %302 : vector<8x128xf32>
    %304 = math.tanh %298 : vector<8x128xf32>
    %305 = vector.extract_strided_slice %303 {offsets = [0, 0], sizes = [8, 32], strides = [1, 1]} : vector<8x128xf32> to vector<8x32xf32>
    %306 = vector.extract_strided_slice %303 {offsets = [0, 32], sizes = [8, 32], strides = [1, 1]} : vector<8x128xf32> to vector<8x32xf32>
    %307 = vector.extract_strided_slice %303 {offsets = [0, 96], sizes = [8, 32], strides = [1, 1]} : vector<8x128xf32> to vector<8x32xf32>
    %308 = vector.extract_strided_slice %304 {offsets = [0, 64], sizes = [8, 32], strides = [1, 1]} : vector<8x128xf32> to vector<8x32xf32>
    %309 = arith.mulf %306, %292 : vector<8x32xf32>
    %310 = arith.mulf %305, %308 : vector<8x32xf32>
    %311 = arith.addf %309, %310 : vector<8x32xf32>
    %312 = math.tanh %311 : vector<8x32xf32>
    %313 = arith.mulf %307, %312 : vector<8x32xf32>
    %c56_93 = arith.constant 56 : index
    %c0_94 = arith.constant 0 : index
    %314 = vector.load %arg10[%c56_93, %c0_94] : memref<64x128xf32, #tpu.memory_space<vmem>>, vector<8x128xf32>
    %315 = arith.truncf %313 : vector<8x32xf32> to vector<8x32xbf16>
    %cst_95 = arith.constant dense<0.000000e+00> : vector<8x128xf32>
    %316 = tpu.matmul %315, %173, %cst_95 {dimension_numbers = #tpu.dot_dimension_numbers<[1], [0], [0], [1], [0, 0, 1, 1], [], []>} : vector<8x32xbf16>, vector<32x128xbf16>, vector<8x128xf32> -> vector<8x128xf32>
    %317 = arith.addf %314, %316 : vector<8x128xf32>
    %318 = arith.negf %317 : vector<8x128xf32>
    %319 = math.exp %318 : vector<8x128xf32>
    %cst_96 = arith.constant 1.000000e+00 : f32
    %320 = vector.broadcast %cst_96 : f32 to vector<8x128xf32>
    %321 = arith.addf %320, %319 : vector<8x128xf32>
    %322 = arith.divf %320, %321 : vector<8x128xf32>
    %323 = math.tanh %317 : vector<8x128xf32>
    %324 = vector.extract_strided_slice %322 {offsets = [0, 0], sizes = [8, 32], strides = [1, 1]} : vector<8x128xf32> to vector<8x32xf32>
    %325 = vector.extract_strided_slice %322 {offsets = [0, 32], sizes = [8, 32], strides = [1, 1]} : vector<8x128xf32> to vector<8x32xf32>
    %326 = vector.extract_strided_slice %322 {offsets = [0, 96], sizes = [8, 32], strides = [1, 1]} : vector<8x128xf32> to vector<8x32xf32>
    %327 = vector.extract_strided_slice %323 {offsets = [0, 64], sizes = [8, 32], strides = [1, 1]} : vector<8x128xf32> to vector<8x32xf32>
    %328 = arith.mulf %325, %311 : vector<8x32xf32>
    %329 = arith.mulf %324, %327 : vector<8x32xf32>
    %330 = arith.addf %328, %329 : vector<8x32xf32>
    %331 = math.tanh %330 : vector<8x32xf32>
    %332 = arith.mulf %326, %331 : vector<8x32xf32>
    %333 = arith.truncf %332 : vector<8x32xf32> to vector<8x32xbf16>
    %c0_97 = arith.constant 0 : index
    %c0_98 = arith.constant 0 : index
    %334 = vector.load %arg7[%c0_97, %c0_98] : memref<32x4xbf16, #tpu.memory_space<vmem>>, vector<32x4xbf16>
    %cst_99 = arith.constant dense<0.000000e+00> : vector<8x4xf32>
    %335 = tpu.matmul %333, %334, %cst_99 {dimension_numbers = #tpu.dot_dimension_numbers<[1], [0], [0], [1], [0, 0, 1, 1], [], []>} : vector<8x32xbf16>, vector<32x4xbf16>, vector<8x4xf32> -> vector<8x4xf32>
    %c0_100 = arith.constant 0 : index
    %c0_101 = arith.constant 0 : index
    %336 = vector.load %arg8[%c0_100, %c0_101] : memref<1x4xf32, #tpu.memory_space<vmem>>, vector<1x4xf32>
    %337 = vector.broadcast %336 : vector<1x4xf32> to vector<8x4xf32>
    %338 = arith.addf %335, %337 : vector<8x4xf32>
    %c0_102 = arith.constant 0 : index
    %c0_103 = arith.constant 0 : index
    %339 = vector.load %arg9[%c0_102, %c0_103] : memref<8x4xf32, #tpu.memory_space<vmem>>, vector<8x4xf32>
    tpu.vector_store %arg9[%c0_102, %c0_103], %338 {strides = array<i32>} : memref<8x4xf32, #tpu.memory_space<vmem>>, vector<8x4xf32>,
    return
  }
}

</mosaic_0001>

<llo_original>
// kernel: lstm_model_forward.1
$region0: #{lstm_model_forward.1}
  #allocation0 [shape = 'u32[]', space=smem, size = 0x4, offset = 0x4, fixed_abs, tag = 'smem constant byte address 0x4 - core index']
  #allocation1 [shape = 'u32[144,128]{1,0:T(1,128)}', space=vmem, size = 0x12000, scoped, tag = 'internal scratch']
  #allocation2 [shape = 'f32[64,128]{1,0:T(8,128)}', space=vmem, size = 0x8000, scoped, tag = 'scratch operand']
  #allocation3 [shape = 'f32[64,32]{1,0:T(8,128)}', space=vmem, size = 0x8000, scoped, tag = 'scratch operand']
  %s0 = inlined_call_operand.vmem [shape: bf16[64,4], index: 0, kind: input, shape index: {}]
  %s1 = inlined_call_operand.vmem [shape: bf16[4,128], index: 1, kind: input, shape index: {}]
  %s2 = inlined_call_operand.vmem [shape: bf16[32,128], index: 2, kind: input, shape index: {}]
  %s3 = inlined_call_operand.vmem [shape: f32[1,128], index: 3, kind: input, shape index: {}]
  %s4 = inlined_call_operand.vmem [shape: bf16[32,128], index: 4, kind: input, shape index: {}]
  %s5 = inlined_call_operand.vmem [shape: bf16[32,128], index: 5, kind: input, shape index: {}]
  %s6 = inlined_call_operand.vmem [shape: f32[1,128], index: 6, kind: input, shape index: {}]
  %s7 = inlined_call_operand.vmem [shape: bf16[32,4], index: 7, kind: input, shape index: {}]
  %s8 = inlined_call_operand.vmem [shape: f32[1,4], index: 8, kind: input, shape index: {}]
  %s9 = inlined_call_operand.vmem [shape: f32[8,4], index: 9, kind: output, shape index: {}]
  %s10 = sld [smem:[#allocation0]]
  $region46: #{lstm_model_forward.1} parent=0
    _
  %s12 = ssub.s32 1, %s10
  %s13 = scalar_select 0, %s12, %s10
  // Predicated region
  $region2: #{lstm_model_forward.1} parent=0 // pred_check
    _
  $region3: #{lstm_model_forward.1} parent=0 // pred_check_branch
    %15 = sbr.rel (0) target = $region5
  $region4: #{lstm_model_forward.1} parent=0 // pred_region
    _
  $region5: #{lstm_model_forward.1} parent=0 // pred_fallthru
    _
  // Predicated region
  $region6: #{lstm_model_forward.1} parent=0 // pred_check
    _
  $region7: #{lstm_model_forward.1} parent=0 // pred_check_branch
    %17 = sbr.rel (0) target = $region9
  $region8: #{lstm_model_forward.1} parent=0 // pred_region
    _
  $region9: #{lstm_model_forward.1} parent=0 // pred_fallthru
    _
  // Predicated region
  $region10: #{lstm_model_forward.1} parent=0 // pred_check
    _
  $region11: #{lstm_model_forward.1} parent=0 // pred_check_branch
    %19 = sbr.rel (0) target = $region13
  $region12: #{lstm_model_forward.1} parent=0 // pred_region
    _
  $region13: #{lstm_model_forward.1} parent=0 // pred_fallthru
    _
  // Predicated region
  $region14: #{lstm_model_forward.1} parent=0 // pred_check
    _
  $region15: #{lstm_model_forward.1} parent=0 // pred_check_branch
    %21 = sbr.rel (0) target = $region17
  $region16: #{lstm_model_forward.1} parent=0 // pred_region
    _
  $region17: #{lstm_model_forward.1} parent=0 // pred_fallthru
    _
  // Predicated region
  $region18: #{lstm_model_forward.1} parent=0 // pred_check
    _
  $region19: #{lstm_model_forward.1} parent=0 // pred_check_branch
    %23 = sbr.rel (0) target = $region21
  $region20: #{lstm_model_forward.1} parent=0 // pred_region
    _
  $region21: #{lstm_model_forward.1} parent=0 // pred_fallthru
    _
  // Predicated region
  $region22: #{lstm_model_forward.1} parent=0 // pred_check
    _
  $region23: #{lstm_model_forward.1} parent=0 // pred_check_branch
    %25 = sbr.rel (0) target = $region25
  $region24: #{lstm_model_forward.1} parent=0 // pred_region
    _
  $region25: #{lstm_model_forward.1} parent=0 // pred_fallthru
    _
  // Predicated region
  $region26: #{lstm_model_forward.1} parent=0 // pred_check
    _
  $region27: #{lstm_model_forward.1} parent=0 // pred_check_branch
    %27 = sbr.rel (0) target = $region29
  $region28: #{lstm_model_forward.1} parent=0 // pred_region
    _
  $region29: #{lstm_model_forward.1} parent=0 // pred_fallthru
    _
  // Predicated region
  $region30: #{lstm_model_forward.1} parent=0 // pred_check
    _
  $region31: #{lstm_model_forward.1} parent=0 // pred_check_branch
    %29 = sbr.rel (0) target = $region33
  $region32: #{lstm_model_forward.1} parent=0 // pred_region
    _
  $region33: #{lstm_model_forward.1} parent=0 // pred_fallthru
    _
  // Predicated region
  $region34: #{lstm_model_forward.1} parent=0 // pred_check
    _
  $region35: #{lstm_model_forward.1} parent=0 // pred_check_branch
    %31 = sbr.rel (0) target = $region37
  $region36: #{lstm_model_forward.1} parent=0 // pred_region
    _
  $region37: #{lstm_model_forward.1} parent=0 // pred_fallthru
    _
  %v33 = vld [vmem:[%s0] sm:$0xf]
  %v34 = vld [vmem:[%s0 + $0x4] sm:$0xf]
  %v35 = vld [vmem:[%s0 + $0x8] sm:$0xf]
  %v36 = vld [vmem:[%s0 + $0xc] sm:$0xf]
  %v37 = vld [vmem:[%s0 + $0x10] sm:$0xf]
  %v38 = vld [vmem:[%s0 + $0x14] sm:$0xf]
  %v39 = vld [vmem:[%s0 + $0x18] sm:$0xf]
  %v40 = vld [vmem:[%s0 + $0x1c] sm:$0xf]
  %v41 = vld [vmem:[%s1] sm:$0x3]
  %v42 = vld [vmem:[%s2] sm:$0xf]
  %v43 = vld [vmem:[%s2 + $0x4] sm:$0xf]
  %v44 = vld [vmem:[%s2 + $0x8] sm:$0xf]
  %v45 = vld [vmem:[%s2 + $0xc] sm:$0xf]
  %v46 = vld [vmem:[%s3] sm:$0x1]
  %v48 = vlaneseq
  %v49 = vshrl.u32 %v48, 7
  %v50 = vsub.s32 0, %v49
  %v51 = vrot.slane %v46, %v50
  %v61 = vunpack.c.l.b16 %v33
  %v62 = vunpack.c.l.b16 %v34
  %v63 = vunpack.c.l.b16 %v35
  %v64 = vunpack.c.l.b16 %v36
  %v65 = vunpack.c.l.b16 %v37
  %v66 = vunpack.c.l.b16 %v38
  %v67 = vunpack.c.l.b16 %v39
  %v68 = vunpack.c.l.b16 %v40
  %v69 = vpack.c.b16 %v62, %v61
  %v70 = vpack.c.b16 %v64, %v63
  %v71 = vpack.c.b16 %v66, %v65
  %v72 = vpack.c.b16 %v68, %v67
  %vm73 = vcmask 31744
  %v75 = vsel %vm73, %v69, 0
  %v78 = vsel %vm73, %v70, 0
  %v81 = vsel %vm73, %v71, 0
  %v84 = vsel %vm73, %v72, 0
  %vm86 = vcmask 1041408
  %v88 = vsel %vm86, %v41, 0
  %90 = vmatprep.subr.bf16.mxu0 0
  %91 = vmatpush1.bf16.msra.mxu0 0
  %92 = vmatprep.subr.bf16.mxu0 0
  %93 = vmatpush1.bf16.msra.mxu0 0
  %94 = vmatprep.subr.bf16.mxu0 0
  %95 = vmatpush1.bf16.msra.mxu0 0
  %96 = vmatprep.subr.bf16.mxu0 0
  %97 = vmatpush1.bf16.msra.mxu0 0
  %98 = vmatprep.subr.bf16.mxu0 0
  %99 = vmatpush1.bf16.msra.mxu0 0
  %100 = vmatprep.subr.bf16.mxu0 0
  %101 = vmatpush1.bf16.msra.mxu0 0
  %102 = vmatprep.subr.bf16.mxu0 0
  %103 = vmatpush1.bf16.msra.mxu0 0
  %104 = vmatprep.subr.bf16.mxu0 0
  %105 = vmatpush1.bf16.msra.mxu0 %v88
  %106 = vmatprep.subr.bf16.mxu0 0
  %107 = vmatpush2.bf16.msra.mxu0 0
  %108 = vmatprep.subr.bf16.mxu0 0
  %109 = vmatpush2.bf16.msra.mxu0 0
  %110 = vmatprep.subr.bf16.mxu0 0
  %111 = vmatpush2.bf16.msra.mxu0 0
  %112 = vmatprep.subr.bf16.mxu0 0
  %113 = vmatpush2.bf16.msra.mxu0 0
  %114 = vmatprep.subr.bf16.mxu0 0
  %115 = vmatpush2.bf16.msra.mxu0 0
  %116 = vmatprep.subr.bf16.mxu0 0
  %117 = vmatpush2.bf16.msra.mxu0 0
  %118 = vmatprep.subr.bf16.mxu0 0
  %119 = vmatpush2.bf16.msra.mxu0 0
  %120 = vmatprep.subr.bf16.mxu0 0
  %121 = vmatpush2.bf16.msra.mxu0 0
  %122 = vmatprep.mubr.bf16.mxu0 0
  %123 = vmatmul.mubr.bf16.gmra.mxu0 %v75
  %v124 = vpop.f32.mrf.mxu0
  %v125 = vadd.f32 %v51, %v124
  %v126 = vpop.f32.mrf.mxu0
  %v127 = vpop.f32.mrf.mxu0
  %v128 = vadd.f32 %v51, %v127
  %v129 = vpop.f32.mrf.mxu0
  %130 = vmatprep.mubr.bf16.mxu0 0
  %131 = vmatmul.mubr.bf16.gmra.mxu0 %v78
  %v132 = vpop.f32.mrf.mxu0
  %v133 = vadd.f32 %v51, %v132
  %v134 = vpop.f32.mrf.mxu0
  %v135 = vpop.f32.mrf.mxu0
  %v136 = vadd.f32 %v51, %v135
  %v137 = vpop.f32.mrf.mxu0
  %138 = vmatprep.mubr.bf16.mxu0 0
  %139 = vmatmul.mubr.bf16.gmra.mxu0 %v81
  %v140 = vpop.f32.mrf.mxu0
  %v141 = vadd.f32 %v51, %v140
  %v142 = vpop.f32.mrf.mxu0
  %v143 = vpop.f32.mrf.mxu0
  %v144 = vadd.f32 %v51, %v143
  %v145 = vpop.f32.mrf.mxu0
  %146 = vmatprep.mubr.bf16.mxu0 0
  %147 = vmatmul.mubr.bf16.gmra.mxu0 %v84
  %v148 = vpop.f32.mrf.mxu0
  %v149 = vadd.f32 %v51, %v148
  %v150 = vpop.f32.mrf.mxu0
  %v151 = vpop.f32.mrf.mxu0
  %v152 = vadd.f32 %v51, %v151
  %v153 = vpop.f32.mrf.mxu0
  %154 = vdwg.mxu0
  %155 = vst [vmem:[#allocation2] sm:$0xff] %v125
  %156 = vst [vmem:[#allocation2 + $0x8] sm:$0xff] %v128
  %157 = vst [vmem:[#allocation2 + $0x10] sm:$0xff] %v133
  %158 = vst [vmem:[#allocation2 + $0x18] sm:$0xff] %v136
  %159 = vst [vmem:[#allocation2 + $0x20] sm:$0xff] %v141
  %160 = vst [vmem:[#allocation2 + $0x28] sm:$0xff] %v144
  %161 = vst [vmem:[#allocation2 + $0x30] sm:$0xff] %v149
  %162 = vst [vmem:[#allocation2 + $0x38] sm:$0xff] %v152
  %v163 = vld [vmem:[#allocation2] sm:$0xff]
  %v168 = vunpack.c.l.b16 %v42
  %v169 = vunpack.c.l.b16 %v43
  %v170 = vunpack.c.l.b16 %v44
  %v171 = vunpack.c.l.b16 %v45
  %v172 = vpack.c.b16 %v169, %v168
  %v173 = vpack.c.b16 %v171, %v170
  %vm176 = vcmask 261120
  %v178 = vsel %vm176, 0, 0
  %180 = vmatprep.subr.bf16.mxu0 0
  %181 = vmatpush1.bf16.msra.mxu0 0
  %182 = vmatprep.subr.bf16.mxu0 0
  %183 = vmatpush1.bf16.msra.mxu0 0
  %184 = vmatprep.subr.bf16.mxu0 0
  %185 = vmatpush1.bf16.msra.mxu0 0
  %186 = vmatprep.subr.bf16.mxu0 0
  %187 = vmatpush1.bf16.msra.mxu0 0
  %188 = vmatprep.subr.bf16.mxu0 0
  %189 = vmatpush1.bf16.msra.mxu0 0
  %190 = vmatprep.subr.bf16.mxu0 0
  %191 = vmatpush1.bf16.msra.mxu0 0
  %192 = vmatprep.subr.bf16.mxu0 0
  %193 = vmatpush1.bf16.msra.mxu0 %v173
  %194 = vmatprep.subr.bf16.mxu0 0
  %195 = vmatpush1.bf16.msra.mxu0 %v172
  %196 = vmatprep.subr.bf16.mxu0 0
  %197 = vmatpush2.bf16.msra.mxu0 0
  %198 = vmatprep.subr.bf16.mxu0 0
  %199 = vmatpush2.bf16.msra.mxu0 0
  %200 = vmatprep.subr.bf16.mxu0 0
  %201 = vmatpush2.bf16.msra.mxu0 0
  %202 = vmatprep.subr.bf16.mxu0 0
  %203 = vmatpush2.bf16.msra.mxu0 0
  %204 = vmatprep.subr.bf16.mxu0 0
  %205 = vmatpush2.bf16.msra.mxu0 0
  %206 = vmatprep.subr.bf16.mxu0 0
  %207 = vmatpush2.bf16.msra.mxu0 0
  %208 = vmatprep.subr.bf16.mxu0 0
  %209 = vmatpush2.bf16.msra.mxu0 0
  %210 = vmatprep.subr.bf16.mxu0 0
  %211 = vmatpush2.bf16.msra.mxu0 0
  %212 = vmatprep.mubr.bf16.mxu0 0
  %213 = vmatmul.mubr.bf16.gmra.mxu0 %v178
  %v214 = vpop.f32.mrf.mxu0
  %v215 = vadd.f32 0.0, %v214
  %v216 = vpop.f32.mrf.mxu0
  %v217 = vpop.f32.mrf.mxu0
  %v218 = vpop.f32.mrf.mxu0
  %219 = vdwg.mxu0
  %v220 = vadd.f32 %v163, %v215
  %v221 = vxor.u32 %v220, 2147483648
  %v222 = vmul.f32 %v221, 1.442695
  %v223 = vpow.pop %v222
  %v224 = vadd.f32 %v223, 1.0
  %v225 = vrcp.pop %v224
  %v226 = vmul.f32 1.0, %v225
  %v227 = vtanh.pop %v220
  %v228 = vmul.f32 %v226, 0.0
  %230 = vrot.lane.b32.xlu0 %v227, 64
  %v231 = vpop.permute.xlu0 %230
  %v233 = vmul.f32 %v226, %v231
  %235 = vrot.lane.b32.xlu0 %v233, 32
  %v236 = vpop.permute.xlu0 %235
  %v238 = vadd.f32 %v228, %v236
  %v239 = vtanh.pop %v238
  %241 = vrot.lane.b32.xlu0 %v239, 64
  %v242 = vpop.permute.xlu0 %241
  %v244 = vmul.f32 %v226, %v242
  %246 = vrot.lane.b32.xlu0 %v244, 32
  %v247 = vpop.permute.xlu0 %246
  %249 = vst.msk [vmem:[#allocation3] sm:$0xff] %vm176, %v247
  %v250 = vld [vmem:[#allocation2 + $0x8] sm:$0xff]
  %v251 = vpack.c.bf16 %v244, %v244
  %253 = vrot.lane.b32.xlu0 %v251, 32
  %v254 = vpop.permute.xlu0 %253
  %v256 = vsel %vm176, %v254, 0
  %258 = vmatprep.subr.bf16.mxu0 0
  %259 = vmatpush1.bf16.msra.mxu0 0
  %260 = vmatprep.subr.bf16.mxu0 0
  %261 = vmatpush1.bf16.msra.mxu0 0
  %262 = vmatprep.subr.bf16.mxu0 0
  %263 = vmatpush1.bf16.msra.mxu0 0
  %264 = vmatprep.subr.bf16.mxu0 0
  %265 = vmatpush1.bf16.msra.mxu0 0
  %266 = vmatprep.subr.bf16.mxu0 0
  %267 = vmatpush1.bf16.msra.mxu0 0
  %268 = vmatprep.subr.bf16.mxu0 0
  %269 = vmatpush1.bf16.msra.mxu0 0
  %270 = vmatprep.subr.bf16.mxu0 0
  %271 = vmatpush1.bf16.msra.mxu0 %v173
  %272 = vmatprep.subr.bf16.mxu0 0
  %273 = vmatpush1.bf16.msra.mxu0 %v172
  %274 = vmatprep.subr.bf16.mxu0 0
  %275 = vmatpush2.bf16.msra.mxu0 0
  %276 = vmatprep.subr.bf16.mxu0 0
  %277 = vmatpush2.bf16.msra.mxu0 0
  %278 = vmatprep.subr.bf16.mxu0 0
  %279 = vmatpush2.bf16.msra.mxu0 0
  %280 = vmatprep.subr.bf16.mxu0 0
  %281 = vmatpush2.bf16.msra.mxu0 0
  %282 = vmatprep.subr.bf16.mxu0 0
  %283 = vmatpush2.bf16.msra.mxu0 0
  %284 = vmatprep.subr.bf16.mxu0 0
  %285 = vmatpush2.bf16.msra.mxu0 0
  %286 = vmatprep.subr.bf16.mxu0 0
  %287 = vmatpush2.bf16.msra.mxu0 0
  %288 = vmatprep.subr.bf16.mxu0 0
  %289 = vmatpush2.bf16.msra.mxu0 0
  %290 = vmatprep.mubr.bf16.mxu0 0
  %291 = vmatmul.mubr.bf16.gmra.mxu0 %v256
  %v292 = vpop.f32.mrf.mxu0
  %v293 = vadd.f32 0.0, %v292
  %v294 = vpop.f32.mrf.mxu0
  %v295 = vpop.f32.mrf.mxu0
  %v296 = vpop.f32.mrf.mxu0
  %297 = vdwg.mxu0
  %v298 = vadd.f32 %v250, %v293
  %v299 = vxor.u32 %v298, 2147483648
  %v300 = vmul.f32 %v299, 1.442695
  %v301 = vpow.pop %v300
  %v302 = vadd.f32 %v301, 1.0
  %v303 = vrcp.pop %v302
  %v304 = vmul.f32 1.0, %v303
  %v305 = vtanh.pop %v298
  %v306 = vmul.f32 %v304, %v238
  %308 = vrot.lane.b32.xlu0 %v305, 64
  %v309 = vpop.permute.xlu0 %308
  %v311 = vmul.f32 %v304, %v309
  %313 = vrot.lane.b32.xlu0 %v311, 32
  %v314 = vpop.permute.xlu0 %313
  %v316 = vadd.f32 %v306, %v314
  %v317 = vtanh.pop %v316
  %319 = vrot.lane.b32.xlu0 %v317, 64
  %v320 = vpop.permute.xlu0 %319
  %v322 = vmul.f32 %v304, %v320
  %324 = vrot.lane.b32.xlu0 %v322, 32
  %v325 = vpop.permute.xlu0 %324
  %327 = vst.msk [vmem:[#allocation3 + $0x8] sm:$0xff] %vm176, %v325
  %v328 = vld [vmem:[#allocation2 + $0x10] sm:$0xff]
  %v329 = vpack.c.bf16 %v322, %v322
  %331 = vrot.lane.b32.xlu0 %v329, 32
  %v332 = vpop.permute.xlu0 %331
  %v334 = vsel %vm176, %v332, 0
  %336 = vmatprep.subr.bf16.mxu0 0
  %337 = vmatpush1.bf16.msra.mxu0 0
  %338 = vmatprep.subr.bf16.mxu0 0
  %339 = vmatpush1.bf16.msra.mxu0 0
  %340 = vmatprep.subr.bf16.mxu0 0
  %341 = vmatpush1.bf16.msra.mxu0 0
  %342 = vmatprep.subr.bf16.mxu0 0
  %343 = vmatpush1.bf16.msra.mxu0 0
  %344 = vmatprep.subr.bf16.mxu0 0
  %345 = vmatpush1.bf16.msra.mxu0 0
  %346 = vmatprep.subr.bf16.mxu0 0
  %347 = vmatpush1.bf16.msra.mxu0 0
  %348 = vmatprep.subr.bf16.mxu0 0
  %349 = vmatpush1.bf16.msra.mxu0 %v173
  %350 = vmatprep.subr.bf16.mxu0 0
  %351 = vmatpush1.bf16.msra.mxu0 %v172
  %352 = vmatprep.subr.bf16.mxu0 0
  %353 = vmatpush2.bf16.msra.mxu0 0
  %354 = vmatprep.subr.bf16.mxu0 0
  %355 = vmatpush2.bf16.msra.mxu0 0
  %356 = vmatprep.subr.bf16.mxu0 0
  %357 = vmatpush2.bf16.msra.mxu0 0
  %358 = vmatprep.subr.bf16.mxu0 0
  %359 = vmatpush2.bf16.msra.mxu0 0
  %360 = vmatprep.subr.bf16.mxu0 0
  %361 = vmatpush2.bf16.msra.mxu0 0
  %362 = vmatprep.subr.bf16.mxu0 0
  %363 = vmatpush2.bf16.msra.mxu0 0
  %364 = vmatprep.subr.bf16.mxu0 0
  %365 = vmatpush2.bf16.msra.mxu0 0
  %366 = vmatprep.subr.bf16.mxu0 0
  %367 = vmatpush2.bf16.msra.mxu0 0
  %368 = vmatprep.mubr.bf16.mxu0 0
  %369 = vmatmul.mubr.bf16.gmra.mxu0 %v334
  %v370 = vpop.f32.mrf.mxu0
  %v371 = vadd.f32 0.0, %v370
  %v372 = vpop.f32.mrf.mxu0
  %v373 = vpop.f32.mrf.mxu0
  %v374 = vpop.f32.mrf.mxu0
  %375 = vdwg.mxu0
  %v376 = vadd.f32 %v328, %v371
  %v377 = vxor.u32 %v376, 2147483648
  %v378 = vmul.f32 %v377, 1.442695
  %v379 = vpow.pop %v378
  %v380 = vadd.f32 %v379, 1.0
  %v381 = vrcp.pop %v380
  %v382 = vmul.f32 1.0, %v381
  %v383 = vtanh.pop %v376
  %v384 = vmul.f32 %v382, %v316
  %386 = vrot.lane.b32.xlu0 %v383, 64
  %v387 = vpop.permute.xlu0 %386
  %v389 = vmul.f32 %v382, %v387
  %391 = vrot.lane.b32.xlu0 %v389, 32
  %v392 = vpop.permute.xlu0 %391
  %v394 = vadd.f32 %v384, %v392
  %v395 = vtanh.pop %v394
  %397 = vrot.lane.b32.xlu0 %v395, 64
  %v398 = vpop.permute.xlu0 %397
  %v400 = vmul.f32 %v382, %v398
  %402 = vrot.lane.b32.xlu0 %v400, 32
  %v403 = vpop.permute.xlu0 %402
  %405 = vst.msk [vmem:[#allocation3 + $0x10] sm:$0xff] %vm176, %v403
  %v406 = vld [vmem:[#allocation2 + $0x18] sm:$0xff]
  %v407 = vpack.c.bf16 %v400, %v400
  %409 = vrot.lane.b32.xlu0 %v407, 32
  %v410 = vpop.permute.xlu0 %409
  %v412 = vsel %vm176, %v410, 0
  %414 = vmatprep.subr.bf16.mxu0 0
  %415 = vmatpush1.bf16.msra.mxu0 0
  %416 = vmatprep.subr.bf16.mxu0 0
  %417 = vmatpush1.bf16.msra.mxu0 0
  %418 = vmatprep.subr.bf16.mxu0 0
  %419 = vmatpush1.bf16.msra.mxu0 0
  %420 = vmatprep.subr.bf16.mxu0 0
  %421 = vmatpush1.bf16.msra.mxu0 0
  %422 = vmatprep.subr.bf16.mxu0 0
  %423 = vmatpush1.bf16.msra.mxu0 0
  %424 = vmatprep.subr.bf16.mxu0 0
  %425 = vmatpush1.bf16.msra.mxu0 0
  %426 = vmatprep.subr.bf16.mxu0 0
  %427 = vmatpush1.bf16.msra.mxu0 %v173
  %428 = vmatprep.subr.bf16.mxu0 0
  %429 = vmatpush1.bf16.msra.mxu0 %v172
  %430 = vmatprep.subr.bf16.mxu0 0
  %431 = vmatpush2.bf16.msra.mxu0 0
  %432 = vmatprep.subr.bf16.mxu0 0
  %433 = vmatpush2.bf16.msra.mxu0 0
  %434 = vmatprep.subr.bf16.mxu0 0
  %435 = vmatpush2.bf16.msra.mxu0 0
  %436 = vmatprep.subr.bf16.mxu0 0
  %437 = vmatpush2.bf16.msra.mxu0 0
  %438 = vmatprep.subr.bf16.mxu0 0
  %439 = vmatpush2.bf16.msra.mxu0 0
  %440 = vmatprep.subr.bf16.mxu0 0
  %441 = vmatpush2.bf16.msra.mxu0 0
  %442 = vmatprep.subr.bf16.mxu0 0
  %443 = vmatpush2.bf16.msra.mxu0 0
  %444 = vmatprep.subr.bf16.mxu0 0
  %445 = vmatpush2.bf16.msra.mxu0 0
  %446 = vmatprep.mubr.bf16.mxu0 0
  %447 = vmatmul.mubr.bf16.gmra.mxu0 %v412
  %v448 = vpop.f32.mrf.mxu0
  %v449 = vadd.f32 0.0, %v448
  %v450 = vpop.f32.mrf.mxu0
  %v451 = vpop.f32.mrf.mxu0
  %v452 = vpop.f32.mrf.mxu0
  %453 = vdwg.mxu0
  %v454 = vadd.f32 %v406, %v449
  %v455 = vxor.u32 %v454, 2147483648
  %v456 = vmul.f32 %v455, 1.442695
  %v457 = vpow.pop %v456
  %v458 = vadd.f32 %v457, 1.0
  %v459 = vrcp.pop %v458
  %v460 = vmul.f32 1.0, %v459
  %v461 = vtanh.pop %v454
  %v462 = vmul.f32 %v460, %v394
  %464 = vrot.lane.b32.xlu0 %v461, 64
  %v465 = vpop.permute.xlu0 %464
  %v467 = vmul.f32 %v460, %v465
  %469 = vrot.lane.b32.xlu0 %v467, 32
  %v470 = vpop.permute.xlu0 %469
  %v472 = vadd.f32 %v462, %v470
  %v473 = vtanh.pop %v472
  %475 = vrot.lane.b32.xlu0 %v473, 64
  %v476 = vpop.permute.xlu0 %475
  %v478 = vmul.f32 %v460, %v476
  %480 = vrot.lane.b32.xlu0 %v478, 32
  %v481 = vpop.permute.xlu0 %480
  %483 = vst.msk [vmem:[#allocation3 + $0x18] sm:$0xff] %vm176, %v481
  %v484 = vld [vmem:[#allocation2 + $0x20] sm:$0xff]
  %v485 = vpack.c.bf16 %v478, %v478
  %487 = vrot.lane.b32.xlu0 %v485, 32
  %v488 = vpop.permute.xlu0 %487
  %v490 = vsel %vm176, %v488, 0
  %492 = vmatprep.subr.bf16.mxu0 0
  %493 = vmatpush1.bf16.msra.mxu0 0
  %494 = vmatprep.subr.bf16.mxu0 0
  %495 = vmatpush1.bf16.msra.mxu0 0
  %496 = vmatprep.subr.bf16.mxu0 0
  %497 = vmatpush1.bf16.msra.mxu0 0
  %498 = vmatprep.subr.bf16.mxu0 0
  %499 = vmatpush1.bf16.msra.mxu0 0
  %500 = vmatprep.subr.bf16.mxu0 0
  %501 = vmatpush1.bf16.msra.mxu0 0
  %502 = vmatprep.subr.bf16.mxu0 0
  %503 = vmatpush1.bf16.msra.mxu0 0
  %504 = vmatprep.subr.bf16.mxu0 0
  %505 = vmatpush1.bf16.msra.mxu0 %v173
  %506 = vmatprep.subr.bf16.mxu0 0
  %507 = vmatpush1.bf16.msra.mxu0 %v172
  %508 = vmatprep.subr.bf16.mxu0 0
  %509 = vmatpush2.bf16.msra.mxu0 0
  %510 = vmatprep.subr.bf16.mxu0 0
  %511 = vmatpush2.bf16.msra.mxu0 0
  %512 = vmatprep.subr.bf16.mxu0 0
  %513 = vmatpush2.bf16.msra.mxu0 0
  %514 = vmatprep.subr.bf16.mxu0 0
  %515 = vmatpush2.bf16.msra.mxu0 0
  %516 = vmatprep.subr.bf16.mxu0 0
  %517 = vmatpush2.bf16.msra.mxu0 0
  %518 = vmatprep.subr.bf16.mxu0 0
  %519 = vmatpush2.bf16.msra.mxu0 0
  %520 = vmatprep.subr.bf16.mxu0 0
  %521 = vmatpush2.bf16.msra.mxu0 0
  %522 = vmatprep.subr.bf16.mxu0 0
  %523 = vmatpush2.bf16.msra.mxu0 0
  %524 = vmatprep.mubr.bf16.mxu0 0
  %525 = vmatmul.mubr.bf16.gmra.mxu0 %v490
  %v526 = vpop.f32.mrf.mxu0
  %v527 = vadd.f32 0.0, %v526
  %v528 = vpop.f32.mrf.mxu0
  %v529 = vpop.f32.mrf.mxu0
  %v530 = vpop.f32.mrf.mxu0
  %531 = vdwg.mxu0
  %v532 = vadd.f32 %v484, %v527
  %v533 = vxor.u32 %v532, 2147483648
  %v534 = vmul.f32 %v533, 1.442695
  %v535 = vpow.pop %v534
  %v536 = vadd.f32 %v535, 1.0
  %v537 = vrcp.pop %v536
  %v538 = vmul.f32 1.0, %v537
  %v539 = vtanh.pop %v532
  %v540 = vmul.f32 %v538, %v472
  %542 = vrot.lane.b32.xlu0 %v539, 64
  %v543 = vpop.permute.xlu0 %542
  %v545 = vmul.f32 %v538, %v543
  %547 = vrot.lane.b32.xlu0 %v545, 32
  %v548 = vpop.permute.xlu0 %547
  %v550 = vadd.f32 %v540, %v548
  %v551 = vtanh.pop %v550
  %553 = vrot.lane.b32.xlu0 %v551, 64
  %v554 = vpop.permute.xlu0 %553
  %v556 = vmul.f32 %v538, %v554
  %558 = vrot.lane.b32.xlu0 %v556, 32
  %v559 = vpop.permute.xlu0 %558
  %561 = vst.msk [vmem:[#allocation3 + $0x20] sm:$0xff] %vm176, %v559
  %v562 = vld [vmem:[#allocation2 + $0x28] sm:$0xff]
  %v563 = vpack.c.bf16 %v556, %v556
  %565 = vrot.lane.b32.xlu0 %v563, 32
  %v566 = vpop.permute.xlu0 %565
  %v568 = vsel %vm176, %v566, 0
  %570 = vmatprep.subr.bf16.mxu0 0
  %571 = vmatpush1.bf16.msra.mxu0 0
  %572 = vmatprep.subr.bf16.mxu0 0
  %573 = vmatpush1.bf16.msra.mxu0 0
  %574 = vmatprep.subr.bf16.mxu0 0
  %575 = vmatpush1.bf16.msra.mxu0 0
  %576 = vmatprep.subr.bf16.mxu0 0
  %577 = vmatpush1.bf16.msra.mxu0 0
  %578 = vmatprep.subr.bf16.mxu0 0
  %579 = vmatpush1.bf16.msra.mxu0 0
  %580 = vmatprep.subr.bf16.mxu0 0
  %581 = vmatpush1.bf16.msra.mxu0 0
  %582 = vmatprep.subr.bf16.mxu0 0
  %583 = vmatpush1.bf16.msra.mxu0 %v173
  %584 = vmatprep.subr.bf16.mxu0 0
  %585 = vmatpush1.bf16.msra.mxu0 %v172
  %586 = vmatprep.subr.bf16.mxu0 0
  %587 = vmatpush2.bf16.msra.mxu0 0
  %588 = vmatprep.subr.bf16.mxu0 0
  %589 = vmatpush2.bf16.msra.mxu0 0
  %590 = vmatprep.subr.bf16.mxu0 0
  %591 = vmatpush2.bf16.msra.mxu0 0
  %592 = vmatprep.subr.bf16.mxu0 0
  %593 = vmatpush2.bf16.msra.mxu0 0
  %594 = vmatprep.subr.bf16.mxu0 0
  %595 = vmatpush2.bf16.msra.mxu0 0
  %596 = vmatprep.subr.bf16.mxu0 0
  %597 = vmatpush2.bf16.msra.mxu0 0
  %598 = vmatprep.subr.bf16.mxu0 0
  %599 = vmatpush2.bf16.msra.mxu0 0
  %600 = vmatprep.subr.bf16.mxu0 0
  %601 = vmatpush2.bf16.msra.mxu0 0
  %602 = vmatprep.mubr.bf16.mxu0 0
  %603 = vmatmul.mubr.bf16.gmra.mxu0 %v568
  %v604 = vpop.f32.mrf.mxu0
  %v605 = vadd.f32 0.0, %v604
  %v606 = vpop.f32.mrf.mxu0
  %v607 = vpop.f32.mrf.mxu0
  %v608 = vpop.f32.mrf.mxu0
  %609 = vdwg.mxu0
  %v610 = vadd.f32 %v562, %v605
  %v611 = vxor.u32 %v610, 2147483648
  %v612 = vmul.f32 %v611, 1.442695
  %v613 = vpow.pop %v612
  %v614 = vadd.f32 %v613, 1.0
  %v615 = vrcp.pop %v614
  %v616 = vmul.f32 1.0, %v615
  %v617 = vtanh.pop %v610
  %v618 = vmul.f32 %v616, %v550
  %620 = vrot.lane.b32.xlu0 %v617, 64
  %v621 = vpop.permute.xlu0 %620
  %v623 = vmul.f32 %v616, %v621
  %625 = vrot.lane.b32.xlu0 %v623, 32
  %v626 = vpop.permute.xlu0 %625
  %v628 = vadd.f32 %v618, %v626
  %v629 = vtanh.pop %v628
  %631 = vrot.lane.b32.xlu0 %v629, 64
  %v632 = vpop.permute.xlu0 %631
  %v634 = vmul.f32 %v616, %v632
  %636 = vrot.lane.b32.xlu0 %v634, 32
  %v637 = vpop.permute.xlu0 %636
  %639 = vst.msk [vmem:[#allocation3 + $0x28] sm:$0xff] %vm176, %v637
  %v640 = vld [vmem:[#allocation2 + $0x30] sm:$0xff]
  %v641 = vpack.c.bf16 %v634, %v634
  %643 = vrot.lane.b32.xlu0 %v641, 32
  %v644 = vpop.permute.xlu0 %643
  %v646 = vsel %vm176, %v644, 0
  %648 = vmatprep.subr.bf16.mxu0 0
  %649 = vmatpush1.bf16.msra.mxu0 0
  %650 = vmatprep.subr.bf16.mxu0 0
  %651 = vmatpush1.bf16.msra.mxu0 0
  %652 = vmatprep.subr.bf16.mxu0 0
  %653 = vmatpush1.bf16.msra.mxu0 0
  %654 = vmatprep.subr.bf16.mxu0 0
  %655 = vmatpush1.bf16.msra.mxu0 0
  %656 = vmatprep.subr.bf16.mxu0 0
  %657 = vmatpush1.bf16.msra.mxu0 0
  %658 = vmatprep.subr.bf16.mxu0 0
  %659 = vmatpush1.bf16.msra.mxu0 0
  %660 = vmatprep.subr.bf16.mxu0 0
  %661 = vmatpush1.bf16.msra.mxu0 %v173
  %662 = vmatprep.subr.bf16.mxu0 0
  %663 = vmatpush1.bf16.msra.mxu0 %v172
  %664 = vmatprep.subr.bf16.mxu0 0
  %665 = vmatpush2.bf16.msra.mxu0 0
  %666 = vmatprep.subr.bf16.mxu0 0
  %667 = vmatpush2.bf16.msra.mxu0 0
  %668 = vmatprep.subr.bf16.mxu0 0
  %669 = vmatpush2.bf16.msra.mxu0 0
  %670 = vmatprep.subr.bf16.mxu0 0
  %671 = vmatpush2.bf16.msra.mxu0 0
  %672 = vmatprep.subr.bf16.mxu0 0
  %673 = vmatpush2.bf16.msra.mxu0 0
  %674 = vmatprep.subr.bf16.mxu0 0
  %675 = vmatpush2.bf16.msra.mxu0 0
  %676 = vmatprep.subr.bf16.mxu0 0
  %677 = vmatpush2.bf16.msra.mxu0 0
  %678 = vmatprep.subr.bf16.mxu0 0
  %679 = vmatpush2.bf16.msra.mxu0 0
  %680 = vmatprep.mubr.bf16.mxu0 0
  %681 = vmatmul.mubr.bf16.gmra.mxu0 %v646
  %v682 = vpop.f32.mrf.mxu0
  %v683 = vadd.f32 0.0, %v682
  %v684 = vpop.f32.mrf.mxu0
  %v685 = vpop.f32.mrf.mxu0
  %v686 = vpop.f32.mrf.mxu0
  %687 = vdwg.mxu0
  %v688 = vadd.f32 %v640, %v683
  %v689 = vxor.u32 %v688, 2147483648
  %v690 = vmul.f32 %v689, 1.442695
  %v691 = vpow.pop %v690
  %v692 = vadd.f32 %v691, 1.0
  %v693 = vrcp.pop %v692
  %v694 = vmul.f32 1.0, %v693
  %v695 = vtanh.pop %v688
  %v696 = vmul.f32 %v694, %v628
  %698 = vrot.lane.b32.xlu0 %v695, 64
  %v699 = vpop.permute.xlu0 %698
  %v701 = vmul.f32 %v694, %v699
  %703 = vrot.lane.b32.xlu0 %v701, 32
  %v704 = vpop.permute.xlu0 %703
  %v706 = vadd.f32 %v696, %v704
  %v707 = vtanh.pop %v706
  %709 = vrot.lane.b32.xlu0 %v707, 64
  %v710 = vpop.permute.xlu0 %709
  %v712 = vmul.f32 %v694, %v710
  %714 = vrot.lane.b32.xlu0 %v712, 32
  %v715 = vpop.permute.xlu0 %714
  %717 = vst.msk [vmem:[#allocation3 + $0x30] sm:$0xff] %vm176, %v715
  %v718 = vld [vmem:[#allocation2 + $0x38] sm:$0xff]
  %v719 = vpack.c.bf16 %v712, %v712
  %721 = vrot.lane.b32.xlu0 %v719, 32
  %v722 = vpop.permute.xlu0 %721
  %v724 = vsel %vm176, %v722, 0
  %726 = vmatprep.subr.bf16.mxu0 0
  %727 = vmatpush1.bf16.msra.mxu0 0
  %728 = vmatprep.subr.bf16.mxu0 0
  %729 = vmatpush1.bf16.msra.mxu0 0
  %730 = vmatprep.subr.bf16.mxu0 0
  %731 = vmatpush1.bf16.msra.mxu0 0
  %732 = vmatprep.subr.bf16.mxu0 0
  %733 = vmatpush1.bf16.msra.mxu0 0
  %734 = vmatprep.subr.bf16.mxu0 0
  %735 = vmatpush1.bf16.msra.mxu0 0
  %736 = vmatprep.subr.bf16.mxu0 0
  %737 = vmatpush1.bf16.msra.mxu0 0
  %738 = vmatprep.subr.bf16.mxu0 0
  %739 = vmatpush1.bf16.msra.mxu0 %v173
  %740 = vmatprep.subr.bf16.mxu0 0
  %741 = vmatpush1.bf16.msra.mxu0 %v172
  %742 = vmatprep.subr.bf16.mxu0 0
  %743 = vmatpush2.bf16.msra.mxu0 0
  %744 = vmatprep.subr.bf16.mxu0 0
  %745 = vmatpush2.bf16.msra.mxu0 0
  %746 = vmatprep.subr.bf16.mxu0 0
  %747 = vmatpush2.bf16.msra.mxu0 0
  %748 = vmatprep.subr.bf16.mxu0 0
  %749 = vmatpush2.bf16.msra.mxu0 0
  %750 = vmatprep.subr.bf16.mxu0 0
  %751 = vmatpush2.bf16.msra.mxu0 0
  %752 = vmatprep.subr.bf16.mxu0 0
  %753 = vmatpush2.bf16.msra.mxu0 0
  %754 = vmatprep.subr.bf16.mxu0 0
  %755 = vmatpush2.bf16.msra.mxu0 0
  %756 = vmatprep.subr.bf16.mxu0 0
  %757 = vmatpush2.bf16.msra.mxu0 0
  %758 = vmatprep.mubr.bf16.mxu0 0
  %759 = vmatmul.mubr.bf16.gmra.mxu0 %v724
  %v760 = vpop.f32.mrf.mxu0
  %v761 = vadd.f32 0.0, %v760
  %v762 = vpop.f32.mrf.mxu0
  %v763 = vpop.f32.mrf.mxu0
  %v764 = vpop.f32.mrf.mxu0
  %765 = vdwg.mxu0
  %v766 = vadd.f32 %v718, %v761
  %v767 = vxor.u32 %v766, 2147483648
  %v768 = vmul.f32 %v767, 1.442695
  %v769 = vpow.pop %v768
  %v770 = vadd.f32 %v769, 1.0
  %v771 = vrcp.pop %v770
  %v772 = vmul.f32 1.0, %v771
  %v773 = vtanh.pop %v766
  %v774 = vmul.f32 %v772, %v706
  %776 = vrot.lane.b32.xlu0 %v773, 64
  %v777 = vpop.permute.xlu0 %776
  %v779 = vmul.f32 %v772, %v777
  %781 = vrot.lane.b32.xlu0 %v779, 32
  %v782 = vpop.permute.xlu0 %781
  %v784 = vadd.f32 %v774, %v782
  %v785 = vtanh.pop %v784
  %787 = vrot.lane.b32.xlu0 %v785, 64
  %v788 = vpop.permute.xlu0 %787
  %v790 = vmul.f32 %v772, %v788
  %792 = vrot.lane.b32.xlu0 %v790, 32
  %v793 = vpop.permute.xlu0 %792
  %795 = vst.msk [vmem:[#allocation3 + $0x38] sm:$0xff] %vm176, %v793
  %v796 = vld [vmem:[#allocation3] sm:$0xff]
  %v797 = vld [vmem:[#allocation3 + $0x8] sm:$0xff]
  %v798 = vld [vmem:[#allocation3 + $0x10] sm:$0xff]
  %v799 = vld [vmem:[#allocation3 + $0x18] sm:$0xff]
  %v800 = vld [vmem:[#allocation3 + $0x20] sm:$0xff]
  %v801 = vld [vmem:[#allocation3 + $0x28] sm:$0xff]
  %v802 = vld [vmem:[#allocation3 + $0x30] sm:$0xff]
  %v803 = vld [vmem:[#allocation3 + $0x38] sm:$0xff]
  %v804 = vpack.c.bf16 %v797, %v796
  %v805 = vpack.c.bf16 %v799, %v798
  %v806 = vpack.c.bf16 %v801, %v800
  %v807 = vpack.c.bf16 %v803, %v802
  %v808 = vld [vmem:[%s4] sm:$0xf]
  %v809 = vld [vmem:[%s4 + $0x4] sm:$0xf]
  %v810 = vld [vmem:[%s4 + $0x8] sm:$0xf]
  %v811 = vld [vmem:[%s4 + $0xc] sm:$0xf]
  %v812 = vld [vmem:[%s5] sm:$0xf]
  %v813 = vld [vmem:[%s5 + $0x4] sm:$0xf]
  %v814 = vld [vmem:[%s5 + $0x8] sm:$0xf]
  %v815 = vld [vmem:[%s5 + $0xc] sm:$0xf]
  %v816 = vld [vmem:[%s6] sm:$0x1]
  %v818 = vlaneseq
  %v819 = vshrl.u32 %v818, 7
  %v820 = vsub.s32 0, %v819
  %v821 = vrot.slane %v816, %v820
  %v827 = vunpack.c.l.b16 %v808
  %v828 = vunpack.c.l.b16 %v809
  %v829 = vunpack.c.l.b16 %v810
  %v830 = vunpack.c.l.b16 %v811
  %v831 = vpack.c.b16 %v828, %v827
  %v832 = vpack.c.b16 %v830, %v829
  %v836 = vsel %vm176, %v804, 0
  %v839 = vsel %vm176, %v805, 0
  %v842 = vsel %vm176, %v806, 0
  %v845 = vsel %vm176, %v807, 0
  %847 = vmatprep.subr.bf16.mxu0 0
  %848 = vmatpush1.bf16.msra.mxu0 0
  %849 = vmatprep.subr.bf16.mxu0 0
  %850 = vmatpush1.bf16.msra.mxu0 0
  %851 = vmatprep.subr.bf16.mxu0 0
  %852 = vmatpush1.bf16.msra.mxu0 0
  %853 = vmatprep.subr.bf16.mxu0 0
  %854 = vmatpush1.bf16.msra.mxu0 0
  %855 = vmatprep.subr.bf16.mxu0 0
  %856 = vmatpush1.bf16.msra.mxu0 0
  %857 = vmatprep.subr.bf16.mxu0 0
  %858 = vmatpush1.bf16.msra.mxu0 0
  %859 = vmatprep.subr.bf16.mxu0 0
  %860 = vmatpush1.bf16.msra.mxu0 %v832
  %861 = vmatprep.subr.bf16.mxu0 0
  %862 = vmatpush1.bf16.msra.mxu0 %v831
  %863 = vmatprep.subr.bf16.mxu0 0
  %864 = vmatpush2.bf16.msra.mxu0 0
  %865 = vmatprep.subr.bf16.mxu0 0
  %866 = vmatpush2.bf16.msra.mxu0 0
  %867 = vmatprep.subr.bf16.mxu0 0
  %868 = vmatpush2.bf16.msra.mxu0 0
  %869 = vmatprep.subr.bf16.mxu0 0
  %870 = vmatpush2.bf16.msra.mxu0 0
  %871 = vmatprep.subr.bf16.mxu0 0
  %872 = vmatpush2.bf16.msra.mxu0 0
  %873 = vmatprep.subr.bf16.mxu0 0
  %874 = vmatpush2.bf16.msra.mxu0 0
  %875 = vmatprep.subr.bf16.mxu0 0
  %876 = vmatpush2.bf16.msra.mxu0 0
  %877 = vmatprep.subr.bf16.mxu0 0
  %878 = vmatpush2.bf16.msra.mxu0 0
  %879 = vmatprep.mubr.bf16.mxu0 0
  %880 = vmatmul.mubr.bf16.gmra.mxu0 %v836
  %v881 = vpop.f32.mrf.mxu0
  %v882 = vadd.f32 %v821, %v881
  %v883 = vpop.f32.mrf.mxu0
  %v884 = vpop.f32.mrf.mxu0
  %v885 = vadd.f32 %v821, %v884
  %v886 = vpop.f32.mrf.mxu0
  %887 = vmatprep.mubr.bf16.mxu0 0
  %888 = vmatmul.mubr.bf16.gmra.mxu0 %v839
  %v889 = vpop.f32.mrf.mxu0
  %v890 = vadd.f32 %v821, %v889
  %v891 = vpop.f32.mrf.mxu0
  %v892 = vpop.f32.mrf.mxu0
  %v893 = vadd.f32 %v821, %v892
  %v894 = vpop.f32.mrf.mxu0
  %895 = vmatprep.mubr.bf16.mxu0 0
  %896 = vmatmul.mubr.bf16.gmra.mxu0 %v842
  %v897 = vpop.f32.mrf.mxu0
  %v898 = vadd.f32 %v821, %v897
  %v899 = vpop.f32.mrf.mxu0
  %v900 = vpop.f32.mrf.mxu0
  %v901 = vadd.f32 %v821, %v900
  %v902 = vpop.f32.mrf.mxu0
  %903 = vmatprep.mubr.bf16.mxu0 0
  %904 = vmatmul.mubr.bf16.gmra.mxu0 %v845
  %v905 = vpop.f32.mrf.mxu0
  %v906 = vadd.f32 %v821, %v905
  %v907 = vpop.f32.mrf.mxu0
  %v908 = vpop.f32.mrf.mxu0
  %v909 = vadd.f32 %v821, %v908
  %v910 = vpop.f32.mrf.mxu0
  %911 = vdwg.mxu0
  %912 = vst [vmem:[#allocation2] sm:$0xff] %v882
  %913 = vst [vmem:[#allocation2 + $0x8] sm:$0xff] %v885
  %914 = vst [vmem:[#allocation2 + $0x10] sm:$0xff] %v890
  %915 = vst [vmem:[#allocation2 + $0x18] sm:$0xff] %v893
  %916 = vst [vmem:[#allocation2 + $0x20] sm:$0xff] %v898
  %917 = vst [vmem:[#allocation2 + $0x28] sm:$0xff] %v901
  %918 = vst [vmem:[#allocation2 + $0x30] sm:$0xff] %v906
  %919 = vst [vmem:[#allocation2 + $0x38] sm:$0xff] %v909
  %v920 = vld [vmem:[#allocation2] sm:$0xff]
  %v925 = vunpack.c.l.b16 %v812
  %v926 = vunpack.c.l.b16 %v813
  %v927 = vunpack.c.l.b16 %v814
  %v928 = vunpack.c.l.b16 %v815
  %v929 = vpack.c.b16 %v926, %v925
  %v930 = vpack.c.b16 %v928, %v927
  %933 = vmatprep.subr.bf16.mxu0 0
  %934 = vmatpush1.bf16.msra.mxu0 0
  %935 = vmatprep.subr.bf16.mxu0 0
  %936 = vmatpush1.bf16.msra.mxu0 0
  %937 = vmatprep.subr.bf16.mxu0 0
  %938 = vmatpush1.bf16.msra.mxu0 0
  %939 = vmatprep.subr.bf16.mxu0 0
  %940 = vmatpush1.bf16.msra.mxu0 0
  %941 = vmatprep.subr.bf16.mxu0 0
  %942 = vmatpush1.bf16.msra.mxu0 0
  %943 = vmatprep.subr.bf16.mxu0 0
  %944 = vmatpush1.bf16.msra.mxu0 0
  %945 = vmatprep.subr.bf16.mxu0 0
  %946 = vmatpush1.bf16.msra.mxu0 %v930
  %947 = vmatprep.subr.bf16.mxu0 0
  %948 = vmatpush1.bf16.msra.mxu0 %v929
  %949 = vmatprep.subr.bf16.mxu0 0
  %950 = vmatpush2.bf16.msra.mxu0 0
  %951 = vmatprep.subr.bf16.mxu0 0
  %952 = vmatpush2.bf16.msra.mxu0 0
  %953 = vmatprep.subr.bf16.mxu0 0
  %954 = vmatpush2.bf16.msra.mxu0 0
  %955 = vmatprep.subr.bf16.mxu0 0
  %956 = vmatpush2.bf16.msra.mxu0 0
  %957 = vmatprep.subr.bf16.mxu0 0
  %958 = vmatpush2.bf16.msra.mxu0 0
  %959 = vmatprep.subr.bf16.mxu0 0
  %960 = vmatpush2.bf16.msra.mxu0 0
  %961 = vmatprep.subr.bf16.mxu0 0
  %962 = vmatpush2.bf16.msra.mxu0 0
  %963 = vmatprep.subr.bf16.mxu0 0
  %964 = vmatpush2.bf16.msra.mxu0 0
  %965 = vmatprep.mubr.bf16.mxu0 0
  %966 = vmatmul.mubr.bf16.gmra.mxu0 %v178
  %v967 = vpop.f32.mrf.mxu0
  %v968 = vadd.f32 0.0, %v967
  %v969 = vpop.f32.mrf.mxu0
  %v970 = vpop.f32.mrf.mxu0
  %v971 = vpop.f32.mrf.mxu0
  %972 = vdwg.mxu0
  %v973 = vadd.f32 %v920, %v968
  %v974 = vxor.u32 %v973, 2147483648
  %v975 = vmul.f32 %v974, 1.442695
  %v976 = vpow.pop %v975
  %v977 = vadd.f32 %v976, 1.0
  %v978 = vrcp.pop %v977
  %v979 = vmul.f32 1.0, %v978
  %v980 = vtanh.pop %v973
  %v981 = vmul.f32 %v979, 0.0
  %983 = vrot.lane.b32.xlu0 %v980, 64
  %v984 = vpop.permute.xlu0 %983
  %v986 = vmul.f32 %v979, %v984
  %988 = vrot.lane.b32.xlu0 %v986, 32
  %v989 = vpop.permute.xlu0 %988
  %v991 = vadd.f32 %v981, %v989
  %v992 = vtanh.pop %v991
  %994 = vrot.lane.b32.xlu0 %v992, 64
  %v995 = vpop.permute.xlu0 %994
  %v997 = vmul.f32 %v979, %v995
  %v998 = vld [vmem:[#allocation2 + $0x8] sm:$0xff]
  %v999 = vpack.c.bf16 %v997, %v997
  %1001 = vrot.lane.b32.xlu0 %v999, 32
  %v1002 = vpop.permute.xlu0 %1001
  %v1004 = vsel %vm176, %v1002, 0
  %1006 = vmatprep.subr.bf16.mxu0 0
  %1007 = vmatpush1.bf16.msra.mxu0 0
  %1008 = vmatprep.subr.bf16.mxu0 0
  %1009 = vmatpush1.bf16.msra.mxu0 0
  %1010 = vmatprep.subr.bf16.mxu0 0
  %1011 = vmatpush1.bf16.msra.mxu0 0
  %1012 = vmatprep.subr.bf16.mxu0 0
  %1013 = vmatpush1.bf16.msra.mxu0 0
  %1014 = vmatprep.subr.bf16.mxu0 0
  %1015 = vmatpush1.bf16.msra.mxu0 0
  %1016 = vmatprep.subr.bf16.mxu0 0
  %1017 = vmatpush1.bf16.msra.mxu0 0
  %1018 = vmatprep.subr.bf16.mxu0 0
  %1019 = vmatpush1.bf16.msra.mxu0 %v930
  %1020 = vmatprep.subr.bf16.mxu0 0
  %1021 = vmatpush1.bf16.msra.mxu0 %v929
  %1022 = vmatprep.subr.bf16.mxu0 0
  %1023 = vmatpush2.bf16.msra.mxu0 0
  %1024 = vmatprep.subr.bf16.mxu0 0
  %1025 = vmatpush2.bf16.msra.mxu0 0
  %1026 = vmatprep.subr.bf16.mxu0 0
  %1027 = vmatpush2.bf16.msra.mxu0 0
  %1028 = vmatprep.subr.bf16.mxu0 0
  %1029 = vmatpush2.bf16.msra.mxu0 0
  %1030 = vmatprep.subr.bf16.mxu0 0
  %1031 = vmatpush2.bf16.msra.mxu0 0
  %1032 = vmatprep.subr.bf16.mxu0 0
  %1033 = vmatpush2.bf16.msra.mxu0 0
  %1034 = vmatprep.subr.bf16.mxu0 0
  %1035 = vmatpush2.bf16.msra.mxu0 0
  %1036 = vmatprep.subr.bf16.mxu0 0
  %1037 = vmatpush2.bf16.msra.mxu0 0
  %1038 = vmatprep.mubr.bf16.mxu0 0
  %1039 = vmatmul.mubr.bf16.gmra.mxu0 %v1004
  %v1040 = vpop.f32.mrf.mxu0
  %v1041 = vadd.f32 0.0, %v1040
  %v1042 = vpop.f32.mrf.mxu0
  %v1043 = vpop.f32.mrf.mxu0
  %v1044 = vpop.f32.mrf.mxu0
  %1045 = vdwg.mxu0
  %v1046 = vadd.f32 %v998, %v1041
  %v1047 = vxor.u32 %v1046, 2147483648
  %v1048 = vmul.f32 %v1047, 1.442695
  %v1049 = vpow.pop %v1048
  %v1050 = vadd.f32 %v1049, 1.0
  %v1051 = vrcp.pop %v1050
  %v1052 = vmul.f32 1.0, %v1051
  %v1053 = vtanh.pop %v1046
  %v1054 = vmul.f32 %v1052, %v991
  %1056 = vrot.lane.b32.xlu0 %v1053, 64
  %v1057 = vpop.permute.xlu0 %1056
  %v1059 = vmul.f32 %v1052, %v1057
  %1061 = vrot.lane.b32.xlu0 %v1059, 32
  %v1062 = vpop.permute.xlu0 %1061
  %v1064 = vadd.f32 %v1054, %v1062
  %v1065 = vtanh.pop %v1064
  %1067 = vrot.lane.b32.xlu0 %v1065, 64
  %v1068 = vpop.permute.xlu0 %1067
  %v1070 = vmul.f32 %v1052, %v1068
  %v1071 = vld [vmem:[#allocation2 + $0x10] sm:$0xff]
  %v1072 = vpack.c.bf16 %v1070, %v1070
  %1074 = vrot.lane.b32.xlu0 %v1072, 32
  %v1075 = vpop.permute.xlu0 %1074
  %v1077 = vsel %vm176, %v1075, 0
  %1079 = vmatprep.subr.bf16.mxu0 0
  %1080 = vmatpush1.bf16.msra.mxu0 0
  %1081 = vmatprep.subr.bf16.mxu0 0
  %1082 = vmatpush1.bf16.msra.mxu0 0
  %1083 = vmatprep.subr.bf16.mxu0 0
  %1084 = vmatpush1.bf16.msra.mxu0 0
  %1085 = vmatprep.subr.bf16.mxu0 0
  %1086 = vmatpush1.bf16.msra.mxu0 0
  %1087 = vmatprep.subr.bf16.mxu0 0
  %1088 = vmatpush1.bf16.msra.mxu0 0
  %1089 = vmatprep.subr.bf16.mxu0 0
  %1090 = vmatpush1.bf16.msra.mxu0 0
  %1091 = vmatprep.subr.bf16.mxu0 0
  %1092 = vmatpush1.bf16.msra.mxu0 %v930
  %1093 = vmatprep.subr.bf16.mxu0 0
  %1094 = vmatpush1.bf16.msra.mxu0 %v929
  %1095 = vmatprep.subr.bf16.mxu0 0
  %1096 = vmatpush2.bf16.msra.mxu0 0
  %1097 = vmatprep.subr.bf16.mxu0 0
  %1098 = vmatpush2.bf16.msra.mxu0 0
  %1099 = vmatprep.subr.bf16.mxu0 0
  %1100 = vmatpush2.bf16.msra.mxu0 0
  %1101 = vmatprep.subr.bf16.mxu0 0
  %1102 = vmatpush2.bf16.msra.mxu0 0
  %1103 = vmatprep.subr.bf16.mxu0 0
  %1104 = vmatpush2.bf16.msra.mxu0 0
  %1105 = vmatprep.subr.bf16.mxu0 0
  %1106 = vmatpush2.bf16.msra.mxu0 0
  %1107 = vmatprep.subr.bf16.mxu0 0
  %1108 = vmatpush2.bf16.msra.mxu0 0
  %1109 = vmatprep.subr.bf16.mxu0 0
  %1110 = vmatpush2.bf16.msra.mxu0 0
  %1111 = vmatprep.mubr.bf16.mxu0 0
  %1112 = vmatmul.mubr.bf16.gmra.mxu0 %v1077
  %v1113 = vpop.f32.mrf.mxu0
  %v1114 = vadd.f32 0.0, %v1113
  %v1115 = vpop.f32.mrf.mxu0
  %v1116 = vpop.f32.mrf.mxu0
  %v1117 = vpop.f32.mrf.mxu0
  %1118 = vdwg.mxu0
  %v1119 = vadd.f32 %v1071, %v1114
  %v1120 = vxor.u32 %v1119, 2147483648
  %v1121 = vmul.f32 %v1120, 1.442695
  %v1122 = vpow.pop %v1121
  %v1123 = vadd.f32 %v1122, 1.0
  %v1124 = vrcp.pop %v1123
  %v1125 = vmul.f32 1.0, %v1124
  %v1126 = vtanh.pop %v1119
  %v1127 = vmul.f32 %v1125, %v1064
  %1129 = vrot.lane.b32.xlu0 %v1126, 64
  %v1130 = vpop.permute.xlu0 %1129
  %v1132 = vmul.f32 %v1125, %v1130
  %1134 = vrot.lane.b32.xlu0 %v1132, 32
  %v1135 = vpop.permute.xlu0 %1134
  %v1137 = vadd.f32 %v1127, %v1135
  %v1138 = vtanh.pop %v1137
  %1140 = vrot.lane.b32.xlu0 %v1138, 64
  %v1141 = vpop.permute.xlu0 %1140
  %v1143 = vmul.f32 %v1125, %v1141
  %v1144 = vld [vmem:[#allocation2 + $0x18] sm:$0xff]
  %v1145 = vpack.c.bf16 %v1143, %v1143
  %1147 = vrot.lane.b32.xlu0 %v1145, 32
  %v1148 = vpop.permute.xlu0 %1147
  %v1150 = vsel %vm176, %v1148, 0
  %1152 = vmatprep.subr.bf16.mxu0 0
  %1153 = vmatpush1.bf16.msra.mxu0 0
  %1154 = vmatprep.subr.bf16.mxu0 0
  %1155 = vmatpush1.bf16.msra.mxu0 0
  %1156 = vmatprep.subr.bf16.mxu0 0
  %1157 = vmatpush1.bf16.msra.mxu0 0
  %1158 = vmatprep.subr.bf16.mxu0 0
  %1159 = vmatpush1.bf16.msra.mxu0 0
  %1160 = vmatprep.subr.bf16.mxu0 0
  %1161 = vmatpush1.bf16.msra.mxu0 0
  %1162 = vmatprep.subr.bf16.mxu0 0
  %1163 = vmatpush1.bf16.msra.mxu0 0
  %1164 = vmatprep.subr.bf16.mxu0 0
  %1165 = vmatpush1.bf16.msra.mxu0 %v930
  %1166 = vmatprep.subr.bf16.mxu0 0
  %1167 = vmatpush1.bf16.msra.mxu0 %v929
  %1168 = vmatprep.subr.bf16.mxu0 0
  %1169 = vmatpush2.bf16.msra.mxu0 0
  %1170 = vmatprep.subr.bf16.mxu0 0
  %1171 = vmatpush2.bf16.msra.mxu0 0
  %1172 = vmatprep.subr.bf16.mxu0 0
  %1173 = vmatpush2.bf16.msra.mxu0 0
  %1174 = vmatprep.subr.bf16.mxu0 0
  %1175 = vmatpush2.bf16.msra.mxu0 0
  %1176 = vmatprep.subr.bf16.mxu0 0
  %1177 = vmatpush2.bf16.msra.mxu0 0
  %1178 = vmatprep.subr.bf16.mxu0 0
  %1179 = vmatpush2.bf16.msra.mxu0 0
  %1180 = vmatprep.subr.bf16.mxu0 0
  %1181 = vmatpush2.bf16.msra.mxu0 0
  %1182 = vmatprep.subr.bf16.mxu0 0
  %1183 = vmatpush2.bf16.msra.mxu0 0
  %1184 = vmatprep.mubr.bf16.mxu0 0
  %1185 = vmatmul.mubr.bf16.gmra.mxu0 %v1150
  %v1186 = vpop.f32.mrf.mxu0
  %v1187 = vadd.f32 0.0, %v1186
  %v1188 = vpop.f32.mrf.mxu0
  %v1189 = vpop.f32.mrf.mxu0
  %v1190 = vpop.f32.mrf.mxu0
  %1191 = vdwg.mxu0
  %v1192 = vadd.f32 %v1144, %v1187
  %v1193 = vxor.u32 %v1192, 2147483648
  %v1194 = vmul.f32 %v1193, 1.442695
  %v1195 = vpow.pop %v1194
  %v1196 = vadd.f32 %v1195, 1.0
  %v1197 = vrcp.pop %v1196
  %v1198 = vmul.f32 1.0, %v1197
  %v1199 = vtanh.pop %v1192
  %v1200 = vmul.f32 %v1198, %v1137
  %1202 = vrot.lane.b32.xlu0 %v1199, 64
  %v1203 = vpop.permute.xlu0 %1202
  %v1205 = vmul.f32 %v1198, %v1203
  %1207 = vrot.lane.b32.xlu0 %v1205, 32
  %v1208 = vpop.permute.xlu0 %1207
  %v1210 = vadd.f32 %v1200, %v1208
  %v1211 = vtanh.pop %v1210
  %1213 = vrot.lane.b32.xlu0 %v1211, 64
  %v1214 = vpop.permute.xlu0 %1213
  %v1216 = vmul.f32 %v1198, %v1214
  %v1217 = vld [vmem:[#allocation2 + $0x20] sm:$0xff]
  %v1218 = vpack.c.bf16 %v1216, %v1216
  %1220 = vrot.lane.b32.xlu0 %v1218, 32
  %v1221 = vpop.permute.xlu0 %1220
  %v1223 = vsel %vm176, %v1221, 0
  %1225 = vmatprep.subr.bf16.mxu0 0
  %1226 = vmatpush1.bf16.msra.mxu0 0
  %1227 = vmatprep.subr.bf16.mxu0 0
  %1228 = vmatpush1.bf16.msra.mxu0 0
  %1229 = vmatprep.subr.bf16.mxu0 0
  %1230 = vmatpush1.bf16.msra.mxu0 0
  %1231 = vmatprep.subr.bf16.mxu0 0
  %1232 = vmatpush1.bf16.msra.mxu0 0
  %1233 = vmatprep.subr.bf16.mxu0 0
  %1234 = vmatpush1.bf16.msra.mxu0 0
  %1235 = vmatprep.subr.bf16.mxu0 0
  %1236 = vmatpush1.bf16.msra.mxu0 0
  %1237 = vmatprep.subr.bf16.mxu0 0
  %1238 = vmatpush1.bf16.msra.mxu0 %v930
  %1239 = vmatprep.subr.bf16.mxu0 0
  %1240 = vmatpush1.bf16.msra.mxu0 %v929
  %1241 = vmatprep.subr.bf16.mxu0 0
  %1242 = vmatpush2.bf16.msra.mxu0 0
  %1243 = vmatprep.subr.bf16.mxu0 0
  %1244 = vmatpush2.bf16.msra.mxu0 0
  %1245 = vmatprep.subr.bf16.mxu0 0
  %1246 = vmatpush2.bf16.msra.mxu0 0
  %1247 = vmatprep.subr.bf16.mxu0 0
  %1248 = vmatpush2.bf16.msra.mxu0 0
  %1249 = vmatprep.subr.bf16.mxu0 0
  %1250 = vmatpush2.bf16.msra.mxu0 0
  %1251 = vmatprep.subr.bf16.mxu0 0
  %1252 = vmatpush2.bf16.msra.mxu0 0
  %1253 = vmatprep.subr.bf16.mxu0 0
  %1254 = vmatpush2.bf16.msra.mxu0 0
  %1255 = vmatprep.subr.bf16.mxu0 0
  %1256 = vmatpush2.bf16.msra.mxu0 0
  %1257 = vmatprep.mubr.bf16.mxu0 0
  %1258 = vmatmul.mubr.bf16.gmra.mxu0 %v1223
  %v1259 = vpop.f32.mrf.mxu0
  %v1260 = vadd.f32 0.0, %v1259
  %v1261 = vpop.f32.mrf.mxu0
  %v1262 = vpop.f32.mrf.mxu0
  %v1263 = vpop.f32.mrf.mxu0
  %1264 = vdwg.mxu0
  %v1265 = vadd.f32 %v1217, %v1260
  %v1266 = vxor.u32 %v1265, 2147483648
  %v1267 = vmul.f32 %v1266, 1.442695
  %v1268 = vpow.pop %v1267
  %v1269 = vadd.f32 %v1268, 1.0
  %v1270 = vrcp.pop %v1269
  %v1271 = vmul.f32 1.0, %v1270
  %v1272 = vtanh.pop %v1265
  %v1273 = vmul.f32 %v1271, %v1210
  %1275 = vrot.lane.b32.xlu0 %v1272, 64
  %v1276 = vpop.permute.xlu0 %1275
  %v1278 = vmul.f32 %v1271, %v1276
  %1280 = vrot.lane.b32.xlu0 %v1278, 32
  %v1281 = vpop.permute.xlu0 %1280
  %v1283 = vadd.f32 %v1273, %v1281
  %v1284 = vtanh.pop %v1283
  %1286 = vrot.lane.b32.xlu0 %v1284, 64
  %v1287 = vpop.permute.xlu0 %1286
  %v1289 = vmul.f32 %v1271, %v1287
  %v1290 = vld [vmem:[#allocation2 + $0x28] sm:$0xff]
  %v1291 = vpack.c.bf16 %v1289, %v1289
  %1293 = vrot.lane.b32.xlu0 %v1291, 32
  %v1294 = vpop.permute.xlu0 %1293
  %v1296 = vsel %vm176, %v1294, 0
  %1298 = vmatprep.subr.bf16.mxu0 0
  %1299 = vmatpush1.bf16.msra.mxu0 0
  %1300 = vmatprep.subr.bf16.mxu0 0
  %1301 = vmatpush1.bf16.msra.mxu0 0
  %1302 = vmatprep.subr.bf16.mxu0 0
  %1303 = vmatpush1.bf16.msra.mxu0 0
  %1304 = vmatprep.subr.bf16.mxu0 0
  %1305 = vmatpush1.bf16.msra.mxu0 0
  %1306 = vmatprep.subr.bf16.mxu0 0
  %1307 = vmatpush1.bf16.msra.mxu0 0
  %1308 = vmatprep.subr.bf16.mxu0 0
  %1309 = vmatpush1.bf16.msra.mxu0 0
  %1310 = vmatprep.subr.bf16.mxu0 0
  %1311 = vmatpush1.bf16.msra.mxu0 %v930
  %1312 = vmatprep.subr.bf16.mxu0 0
  %1313 = vmatpush1.bf16.msra.mxu0 %v929
  %1314 = vmatprep.subr.bf16.mxu0 0
  %1315 = vmatpush2.bf16.msra.mxu0 0
  %1316 = vmatprep.subr.bf16.mxu0 0
  %1317 = vmatpush2.bf16.msra.mxu0 0
  %1318 = vmatprep.subr.bf16.mxu0 0
  %1319 = vmatpush2.bf16.msra.mxu0 0
  %1320 = vmatprep.subr.bf16.mxu0 0
  %1321 = vmatpush2.bf16.msra.mxu0 0
  %1322 = vmatprep.subr.bf16.mxu0 0
  %1323 = vmatpush2.bf16.msra.mxu0 0
  %1324 = vmatprep.subr.bf16.mxu0 0
  %1325 = vmatpush2.bf16.msra.mxu0 0
  %1326 = vmatprep.subr.bf16.mxu0 0
  %1327 = vmatpush2.bf16.msra.mxu0 0
  %1328 = vmatprep.subr.bf16.mxu0 0
  %1329 = vmatpush2.bf16.msra.mxu0 0
  %1330 = vmatprep.mubr.bf16.mxu0 0
  %1331 = vmatmul.mubr.bf16.gmra.mxu0 %v1296
  %v1332 = vpop.f32.mrf.mxu0
  %v1333 = vadd.f32 0.0, %v1332
  %v1334 = vpop.f32.mrf.mxu0
  %v1335 = vpop.f32.mrf.mxu0
  %v1336 = vpop.f32.mrf.mxu0
  %1337 = vdwg.mxu0
  %v1338 = vadd.f32 %v1290, %v1333
  %v1339 = vxor.u32 %v1338, 2147483648
  %v1340 = vmul.f32 %v1339, 1.442695
  %v1341 = vpow.pop %v1340
  %v1342 = vadd.f32 %v1341, 1.0
  %v1343 = vrcp.pop %v1342
  %v1344 = vmul.f32 1.0, %v1343
  %v1345 = vtanh.pop %v1338
  %v1346 = vmul.f32 %v1344, %v1283
  %1348 = vrot.lane.b32.xlu0 %v1345, 64
  %v1349 = vpop.permute.xlu0 %1348
  %v1351 = vmul.f32 %v1344, %v1349
  %1353 = vrot.lane.b32.xlu0 %v1351, 32
  %v1354 = vpop.permute.xlu0 %1353
  %v1356 = vadd.f32 %v1346, %v1354
  %v1357 = vtanh.pop %v1356
  %1359 = vrot.lane.b32.xlu0 %v1357, 64
  %v1360 = vpop.permute.xlu0 %1359
  %v1362 = vmul.f32 %v1344, %v1360
  %v1363 = vld [vmem:[#allocation2 + $0x30] sm:$0xff]
  %v1364 = vpack.c.bf16 %v1362, %v1362
  %1366 = vrot.lane.b32.xlu0 %v1364, 32
  %v1367 = vpop.permute.xlu0 %1366
  %v1369 = vsel %vm176, %v1367, 0
  %1371 = vmatprep.subr.bf16.mxu0 0
  %1372 = vmatpush1.bf16.msra.mxu0 0
  %1373 = vmatprep.subr.bf16.mxu0 0
  %1374 = vmatpush1.bf16.msra.mxu0 0
  %1375 = vmatprep.subr.bf16.mxu0 0
  %1376 = vmatpush1.bf16.msra.mxu0 0
  %1377 = vmatprep.subr.bf16.mxu0 0
  %1378 = vmatpush1.bf16.msra.mxu0 0
  %1379 = vmatprep.subr.bf16.mxu0 0
  %1380 = vmatpush1.bf16.msra.mxu0 0
  %1381 = vmatprep.subr.bf16.mxu0 0
  %1382 = vmatpush1.bf16.msra.mxu0 0
  %1383 = vmatprep.subr.bf16.mxu0 0
  %1384 = vmatpush1.bf16.msra.mxu0 %v930
  %1385 = vmatprep.subr.bf16.mxu0 0
  %1386 = vmatpush1.bf16.msra.mxu0 %v929
  %1387 = vmatprep.subr.bf16.mxu0 0
  %1388 = vmatpush2.bf16.msra.mxu0 0
  %1389 = vmatprep.subr.bf16.mxu0 0
  %1390 = vmatpush2.bf16.msra.mxu0 0
  %1391 = vmatprep.subr.bf16.mxu0 0
  %1392 = vmatpush2.bf16.msra.mxu0 0
  %1393 = vmatprep.subr.bf16.mxu0 0
  %1394 = vmatpush2.bf16.msra.mxu0 0
  %1395 = vmatprep.subr.bf16.mxu0 0
  %1396 = vmatpush2.bf16.msra.mxu0 0
  %1397 = vmatprep.subr.bf16.mxu0 0
  %1398 = vmatpush2.bf16.msra.mxu0 0
  %1399 = vmatprep.subr.bf16.mxu0 0
  %1400 = vmatpush2.bf16.msra.mxu0 0
  %1401 = vmatprep.subr.bf16.mxu0 0
  %1402 = vmatpush2.bf16.msra.mxu0 0
  %1403 = vmatprep.mubr.bf16.mxu0 0
  %1404 = vmatmul.mubr.bf16.gmra.mxu0 %v1369
  %v1405 = vpop.f32.mrf.mxu0
  %v1406 = vadd.f32 0.0, %v1405
  %v1407 = vpop.f32.mrf.mxu0
  %v1408 = vpop.f32.mrf.mxu0
  %v1409 = vpop.f32.mrf.mxu0
  %1410 = vdwg.mxu0
  %v1411 = vadd.f32 %v1363, %v1406
  %v1412 = vxor.u32 %v1411, 2147483648
  %v1413 = vmul.f32 %v1412, 1.442695
  %v1414 = vpow.pop %v1413
  %v1415 = vadd.f32 %v1414, 1.0
  %v1416 = vrcp.pop %v1415
  %v1417 = vmul.f32 1.0, %v1416
  %v1418 = vtanh.pop %v1411
  %v1419 = vmul.f32 %v1417, %v1356
  %1421 = vrot.lane.b32.xlu0 %v1418, 64
  %v1422 = vpop.permute.xlu0 %1421
  %v1424 = vmul.f32 %v1417, %v1422
  %1426 = vrot.lane.b32.xlu0 %v1424, 32
  %v1427 = vpop.permute.xlu0 %1426
  %v1429 = vadd.f32 %v1419, %v1427
  %v1430 = vtanh.pop %v1429
  %1432 = vrot.lane.b32.xlu0 %v1430, 64
  %v1433 = vpop.permute.xlu0 %1432
  %v1435 = vmul.f32 %v1417, %v1433
  %v1436 = vld [vmem:[#allocation2 + $0x38] sm:$0xff]
  %v1437 = vpack.c.bf16 %v1435, %v1435
  %1439 = vrot.lane.b32.xlu0 %v1437, 32
  %v1440 = vpop.permute.xlu0 %1439
  %v1442 = vsel %vm176, %v1440, 0
  %1444 = vmatprep.subr.bf16.mxu0 0
  %1445 = vmatpush1.bf16.msra.mxu0 0
  %1446 = vmatprep.subr.bf16.mxu0 0
  %1447 = vmatpush1.bf16.msra.mxu0 0
  %1448 = vmatprep.subr.bf16.mxu0 0
  %1449 = vmatpush1.bf16.msra.mxu0 0
  %1450 = vmatprep.subr.bf16.mxu0 0
  %1451 = vmatpush1.bf16.msra.mxu0 0
  %1452 = vmatprep.subr.bf16.mxu0 0
  %1453 = vmatpush1.bf16.msra.mxu0 0
  %1454 = vmatprep.subr.bf16.mxu0 0
  %1455 = vmatpush1.bf16.msra.mxu0 0
  %1456 = vmatprep.subr.bf16.mxu0 0
  %1457 = vmatpush1.bf16.msra.mxu0 %v930
  %1458 = vmatprep.subr.bf16.mxu0 0
  %1459 = vmatpush1.bf16.msra.mxu0 %v929
  %1460 = vmatprep.subr.bf16.mxu0 0
  %1461 = vmatpush2.bf16.msra.mxu0 0
  %1462 = vmatprep.subr.bf16.mxu0 0
  %1463 = vmatpush2.bf16.msra.mxu0 0
  %1464 = vmatprep.subr.bf16.mxu0 0
  %1465 = vmatpush2.bf16.msra.mxu0 0
  %1466 = vmatprep.subr.bf16.mxu0 0
  %1467 = vmatpush2.bf16.msra.mxu0 0
  %1468 = vmatprep.subr.bf16.mxu0 0
  %1469 = vmatpush2.bf16.msra.mxu0 0
  %1470 = vmatprep.subr.bf16.mxu0 0
  %1471 = vmatpush2.bf16.msra.mxu0 0
  %1472 = vmatprep.subr.bf16.mxu0 0
  %1473 = vmatpush2.bf16.msra.mxu0 0
  %1474 = vmatprep.subr.bf16.mxu0 0
  %1475 = vmatpush2.bf16.msra.mxu0 0
  %1476 = vmatprep.mubr.bf16.mxu0 0
  %1477 = vmatmul.mubr.bf16.gmra.mxu0 %v1442
  %v1478 = vpop.f32.mrf.mxu0
  %v1479 = vadd.f32 0.0, %v1478
  %v1480 = vpop.f32.mrf.mxu0
  %v1481 = vpop.f32.mrf.mxu0
  %v1482 = vpop.f32.mrf.mxu0
  %1483 = vdwg.mxu0
  %v1484 = vadd.f32 %v1436, %v1479
  %v1485 = vxor.u32 %v1484, 2147483648
  %v1486 = vmul.f32 %v1485, 1.442695
  %v1487 = vpow.pop %v1486
  %v1488 = vadd.f32 %v1487, 1.0
  %v1489 = vrcp.pop %v1488
  %v1490 = vmul.f32 1.0, %v1489
  %v1491 = vtanh.pop %v1484
  %v1492 = vmul.f32 %v1490, %v1429
  %1494 = vrot.lane.b32.xlu0 %v1491, 64
  %v1495 = vpop.permute.xlu0 %1494
  %v1497 = vmul.f32 %v1490, %v1495
  %1499 = vrot.lane.b32.xlu0 %v1497, 32
  %v1500 = vpop.permute.xlu0 %1499
  %v1502 = vadd.f32 %v1492, %v1500
  %v1503 = vtanh.pop %v1502
  %1505 = vrot.lane.b32.xlu0 %v1503, 64
  %v1506 = vpop.permute.xlu0 %1505
  %v1508 = vmul.f32 %v1490, %v1506
  %v1509 = vpack.c.bf16 %v1508, %v1508
  %v1510 = vld [vmem:[%s7] sm:$0xf]
  %v1511 = vld [vmem:[%s7 + $0x4] sm:$0xf]
  %v1512 = vld [vmem:[%s7 + $0x8] sm:$0xf]
  %v1513 = vld [vmem:[%s7 + $0xc] sm:$0xf]
  %v1514 = vld [vmem:[%s8] sm:$0x1]
  %v1516 = vlaneseq
  %v1517 = vshrl.u32 %v1516, 7
  %v1518 = vsub.s32 0, %v1517
  %v1519 = vrot.slane %v1514, %v1518
  %1522 = vrot.lane.b32.xlu0 %v1509, 32
  %v1523 = vpop.permute.xlu0 %1522
  %v1528 = vunpack.c.l.b16 %v1510
  %v1529 = vunpack.c.l.b16 %v1511
  %v1530 = vunpack.c.l.b16 %v1512
  %v1531 = vunpack.c.l.b16 %v1513
  %v1532 = vpack.c.b16 %v1529, %v1528
  %v1533 = vpack.c.b16 %v1531, %v1530
  %v1537 = vsel %vm176, %v1523, 0
  %1539 = vmatprep.subr.bf16.mxu0 0
  %1540 = vmatpush1.bf16.msra.mxu0 0
  %1541 = vmatprep.subr.bf16.mxu0 0
  %1542 = vmatpush1.bf16.msra.mxu0 0
  %1543 = vmatprep.subr.bf16.mxu0 0
  %1544 = vmatpush1.bf16.msra.mxu0 0
  %1545 = vmatprep.subr.bf16.mxu0 0
  %1546 = vmatpush1.bf16.msra.mxu0 0
  %1547 = vmatprep.subr.bf16.mxu0 0
  %1548 = vmatpush1.bf16.msra.mxu0 0
  %1549 = vmatprep.subr.bf16.mxu0 0
  %1550 = vmatpush1.bf16.msra.mxu0 0
  %1551 = vmatprep.subr.bf16.mxu0 0
  %1552 = vmatpush1.bf16.msra.mxu0 %v1533
  %1553 = vmatprep.subr.bf16.mxu0 0
  %1554 = vmatpush1.bf16.msra.mxu0 %v1532
  %1555 = vmatprep.subr.bf16.mxu0 0
  %1556 = vmatpush2.bf16.msra.mxu0 0
  %1557 = vmatprep.subr.bf16.mxu0 0
  %1558 = vmatpush2.bf16.msra.mxu0 0
  %1559 = vmatprep.subr.bf16.mxu0 0
  %1560 = vmatpush2.bf16.msra.mxu0 0
  %1561 = vmatprep.subr.bf16.mxu0 0
  %1562 = vmatpush2.bf16.msra.mxu0 0
  %1563 = vmatprep.subr.bf16.mxu0 0
  %1564 = vmatpush2.bf16.msra.mxu0 0
  %1565 = vmatprep.subr.bf16.mxu0 0
  %1566 = vmatpush2.bf16.msra.mxu0 0
  %1567 = vmatprep.subr.bf16.mxu0 0
  %1568 = vmatpush2.bf16.msra.mxu0 0
  %1569 = vmatprep.subr.bf16.mxu0 0
  %1570 = vmatpush2.bf16.msra.mxu0 0
  %1571 = vmatprep.mubr.bf16.mxu0 0
  %1572 = vmatmul.mubr.bf16.gmra.mxu0 %v1537
  %v1573 = vpop.f32.mrf.mxu0
  %v1574 = vadd.f32 %v1519, %v1573
  %v1575 = vpop.f32.mrf.mxu0
  %v1576 = vpop.f32.mrf.mxu0
  %v1577 = vpop.f32.mrf.mxu0
  %1578 = vdwg.mxu0
  %1579 = vst.msk [vmem:[%s9] sm:$0xff] %vm73, %v1574
  // Predicated region
  $region38: #{lstm_model_forward.1} parent=0 // pred_check
    _
  $region39: #{lstm_model_forward.1} parent=0 // pred_check_branch
    %1581 = sbr.rel (0) target = $region41
  $region40: #{lstm_model_forward.1} parent=0 // pred_region
    _
  $region41: #{lstm_model_forward.1} parent=0 // pred_fallthru
    _
  // Predicated region
  $region42: #{lstm_model_forward.1} parent=0 // pred_check
    _
  $region43: #{lstm_model_forward.1} parent=0 // pred_check_branch
    %1583 = sbr.rel (0) target = $region45
  $region44: #{lstm_model_forward.1} parent=0 // pred_region
    _
  $region45: #{lstm_model_forward.1} parent=0 // pred_fallthru
    _

</llo_original>
